<compile_context>
chip_gen: v5e
topology: v5e:2x2
jax: 0.10.0
libtpu: 0.0.40
codegen_flags: <defaults>
</compile_context>

<pallas_src>
import functools

import numpy as np
import jax
import jax.numpy as jnp
from jax.experimental import pallas as pl
from jax.experimental.pallas import tpu as pltpu

L_IN = 84      # -> MaxPool2: 42 -> MaxPool2: 21 -> AvgPool3: 7 -> 16*7 = 112
Z_DIM = 32
BN_EPS = 1e-5
F32 = jnp.float32


# --------------------------------------------------------------------------- #
# Pallas kernel (closure over the static slab layout and batch size)
# --------------------------------------------------------------------------- #
def make_kernel(layout, B):
    L1, L2, L3 = L_IN, L_IN // 2, L_IN // 4        # 84, 42, 21

    def kernel(x_ref, slab_ref, flat_ref, up3_ref, y_ref, zt_ref):
        def get(name):
            r, h, w = layout[name]
            return slab_ref[pl.ds(r, h), pl.ds(0, w)]

        # -- per-length edge masks, built once from an iota (no slab traffic) --
        def edge_masks(L):
            N = B * L
            j = jax.lax.broadcasted_iota(jnp.int32, (1, N), 1).astype(F32)
            pos = j - jnp.floor(j / float(L)) * float(L)       # exact small ints
            m_first = (pos > 0.5).astype(F32)                  # pos != 0
            m_last = (pos < float(L) - 1.5).astype(F32)        # pos != L-1
            return m_first, m_last

        masks = {L: edge_masks(L) for L in (L1, L2, L3)}

        def conv1d(x, wname, bname, L):
            # 'same' conv, k=3, pad=1: one fused (Co,3Ci)x(3Ci,B*L) matmul.
            mL, mR = masks[L]
            xl = jnp.roll(x, 1, axis=1) * mL       # x[:, j-1], zeroed at sample starts
            xr = jnp.roll(x, -1, axis=1) * mR      # x[:, j+1], zeroed at sample ends
            xs = jnp.concatenate([xl, x, xr], axis=0)
            return jnp.dot(get(wname), xs, preferred_element_type=F32) + get(bname)

        def batchnorm(x, gname, bname):
            # training-mode BN; stats over (batch, length) = all lanes.
            inv_n = 1.0 / x.shape[1]
            s1 = jnp.sum(x, axis=1, keepdims=True)
            s2 = jnp.sum(x * x, axis=1, keepdims=True)
            mean = s1 * inv_n
            var = s2 * inv_n - mean * mean
            return get(gname) * (x - mean) * jax.lax.rsqrt(var + BN_EPS) + get(bname)

        def relu(x):
            return jnp.maximum(x, 0.0)

        def per_sample(x, sname, Lin):
            # block-diagonal (I_B kron S): B small matmuls with a B-independent S.
            S = get(sname)
            parts = [jnp.dot(x[:, b * Lin:(b + 1) * Lin], S,
                             preferred_element_type=F32) for b in range(B)]
            return parts[0] if B == 1 else jnp.concatenate(parts, axis=1)

        def maxpool2(x, sname, L):
            m = jnp.maximum(x, jnp.roll(x, -1, axis=1))   # only even lanes consumed
            return per_sample(m, sname, L)

        # -------------------------------- encoder ---------------------------
        h = x_ref[...]                                        # (1, B*84)
        h = conv1d(h, "c1w", "c1b", L1)                       # (8, B*84)
        h = maxpool2(relu(batchnorm(h, "g1", "b1")), "E84", L1)   # (8, B*42)
        h = conv1d(h, "c2w", "c2b", L2)                       # (16, B*42)
        h = maxpool2(relu(batchnorm(h, "g2", "b2")), "E42", L2)   # (16, B*21)
        h = conv1d(h, "c3w", "c3b", L3)                       # (16, B*21)
        h3 = relu(batchnorm(h, "g3", "b3"))                   # (16, B*21)

        # AvgPool3 + Flatten + Linear(112,32) fused: 7 pairs of small matmuls.
        few = get("few")                                      # (32,112) l-major, /3 folded
        zt = None
        for l in range(7):
            hp_l = jnp.dot(h3, flat_ref[l], preferred_element_type=F32)   # (16, B)
            t = jnp.dot(few[:, l * 16:(l + 1) * 16], hp_l,
                        preferred_element_type=F32)                        # (32, B)
            zt = t if zt is None else zt + t
        zt = zt + get("feb")                                  # (32, B)

        # -------------------------------- decoder ---------------------------
        hd = jnp.dot(get("fdw"), zt, preferred_element_type=F32)   # (112,B), rows l*16+c
        fdb7 = get("fdb7")                                          # (16, 7)
        hu = None
        for l in range(7):
            hd_l = hd[l * 16:(l + 1) * 16, :] + fdb7[:, l:l + 1]    # (16, B)
            t = jnp.dot(hd_l, up3_ref[l], preferred_element_type=F32)   # (16, B*21)
            hu = t if hu is None else hu + t
        h = conv1d(hu, "d1w", "d1b", L3)                      # (16, B*21)
        h = relu(batchnorm(h, "g4", "b4"))
        h = per_sample(h, "U21", L3)                          # (16, B*42) upsample x2
        h = conv1d(h, "d2w", "d2b", L2)                       # (8, B*42)
        h = relu(batchnorm(h, "g5", "b5"))
        h = per_sample(h, "U42", L2)                          # (8, B*84) upsample x2
        h = conv1d(h, "d3w", "d3b", L1)                       # (1, B*84)

        y_ref[...] = h                                        # lane-dense single row
        zt_ref[...] = zt

    return kernel


# --------------------------------------------------------------------------- #
# Host-side helpers
# --------------------------------------------------------------------------- #
def pack_conv_w(w):
    # (Co, Ci, 3) -> (Co, 3*Ci) with w2[o, k*Ci + i] = w[o, i, k]
    w = jnp.asarray(w, F32)
    Co, Ci, K = w.shape
    return jnp.transpose(w, (0, 2, 1)).reshape(Co, K * Ci)


def convT_to_conv(wt):
    # ConvTranspose1d (Cin, Cout, 3), stride=1, pad=1 == 'same' conv with
    # flipped kernel: w_eff[o, i, k] = wt[i, o, 2 - k]
    return jnp.transpose(jnp.flip(jnp.asarray(wt, F32), axis=2), (1, 0, 2))


def _sel_maxpool_even(L):
    s = np.zeros((L, L // 2), np.float32)
    q = np.arange(L // 2)
    s[2 * q, q] = 1.0
    return s


def _sel_upsample2(L):
    s = np.zeros((L, 2 * L), np.float32)
    l = np.arange(L)
    s[l, 2 * l] = 1.0
    s[l, 2 * l + 1] = 1.0
    return s


def _flatten_gather(B):
    # (7, 21B, B): column b of slice l sums the 3 avgpool taps of position l.
    d = np.zeros((7, 21 * B, B), np.float32)
    for l in range(7):
        for b in range(B):
            d[l, b * 21 + 3 * l: b * 21 + 3 * l + 3, b] = 1.0
    return d


def _unflatten_scatter(B):
    # (7, B, 21B): row b of slice l scatters to lanes b*21 + 3l + {0,1,2}.
    g = np.zeros((7, B, 21 * B), np.float32)
    for l in range(7):
        for b in range(B):
            g[l, b, b * 21 + 3 * l: b * 21 + 3 * l + 3] = 1.0
    return g


def build_slab(params):
    """Pack all B-independent parameters / selection matrices into one narrow
    (rows, 112) f32 slab (single DMA, no lane padding to B*84)."""
    p = params
    # l-major permutation of the 112 flat features: new index l*16+c <- old c*7+l
    perm = np.array([(j % 16) * 7 + (j // 16) for j in range(112)])

    items = []

    def add(name, arr):
        a = jnp.asarray(arr, F32)
        if a.ndim == 1:
            a = a[:, None]
        items.append((name, a))

    add("c1w", pack_conv_w(p["c1w"])); add("c1b", p["c1b"])
    add("g1", p["g1"]); add("b1", p["b1"])
    add("c2w", pack_conv_w(p["c2w"])); add("c2b", p["c2b"])
    add("g2", p["g2"]); add("b2", p["b2"])
    add("c3w", pack_conv_w(p["c3w"])); add("c3b", p["c3b"])
    add("g3", p["g3"]); add("b3", p["b3"])
    add("few", jnp.asarray(p["few"], F32)[:, perm] / 3.0)   # avgpool 1/3 folded in
    add("feb", p["feb"])
    add("fdw", jnp.asarray(p["fdw"], F32)[perm, :])
    add("fdb7", jnp.asarray(p["fdb"], F32).reshape(16, 7))
    add("d1w", pack_conv_w(convT_to_conv(p["d1w"]))); add("d1b", p["d1b"])
    add("g4", p["g4"]); add("b4", p["b4"])
    add("d2w", pack_conv_w(convT_to_conv(p["d2w"]))); add("d2b", p["d2b"])
    add("g5", p["g5"]); add("b5", p["b5"])
    add("d3w", pack_conv_w(convT_to_conv(p["d3w"]))); add("d3b", p["d3b"])
    add("E84", _sel_maxpool_even(84))
    add("E42", _sel_maxpool_even(42))
    add("U21", _sel_upsample2(21))
    add("U42", _sel_upsample2(42))

    width = max(int(a.shape[1]) for _, a in items)           # 112
    layout = {}
    blocks = []
    row = 0
    for name, a in items:
        h, w = int(a.shape[0]), int(a.shape[1])
        layout[name] = (row, h, w)
        hp = -(-h // 8) * 8                                  # sublane-align each entry
        blk = jnp.zeros((hp, width), F32).at[:h, :w].set(a)
        blocks.append(blk)
        row += hp
    slab = jnp.concatenate(blocks, axis=0)
    return slab, layout


# --------------------------------------------------------------------------- #
# Wrapper
# --------------------------------------------------------------------------- #
def _forward_impl(x1, params):
    B, L = x1.shape
    if L != L_IN:
        raise ValueError("encoder Linear(16*7, 32) implies input length 84")

    slab, layout = build_slab(params)
    flat_mats = jnp.asarray(_flatten_gather(B))     # (7, 21B, B)
    up3_mats = jnp.asarray(_unflatten_scatter(B))   # (7, B, 21B)
    x_row = x1.astype(F32).reshape(1, B * L_IN)

    kernel = make_kernel(layout, B)
    vmem = pl.BlockSpec(memory_space=pltpu.MemorySpace.VMEM)

    in_bytes = 4 * (x_row.size + slab.size + flat_mats.size + up3_mats.size)
    out_bytes = 4 * (B * L_IN + Z_DIM * B)
    vmem_limit = int(min(64 * 2 ** 20, max(16 * 2 ** 20, 6 * (in_bytes + out_bytes))))

    y_row, zt = pl.pallas_call(
        kernel,
        out_shape=(jax.ShapeDtypeStruct((1, B * L_IN), F32),
                   jax.ShapeDtypeStruct((Z_DIM, B), F32)),
        in_specs=[vmem, vmem, vmem, vmem],
        out_specs=(vmem, vmem),
        compiler_params=pltpu.CompilerParams(vmem_limit_bytes=vmem_limit),
        cost_estimate=pl.CostEstimate(
            flops=int(350_000 * B + 10_000 * B * B),
            transcendentals=80,
            bytes_accessed=int(in_bytes + out_bytes)),
    )(x_row, slab, flat_mats, up3_mats)

    return y_row.reshape(B, L_IN), zt.T


_forward_jit = jax.jit(_forward_impl)


def cnn1d_forward(x1, params, x2=None):
    # x2 feeds only the fine-tune head (General(32), undefined); unused here.
    del x2
    return _forward_jit(x1, params)


# --------------------------------------------------------------------------- #
# Parameter init (deterministic) and pure-JAX reference
# --------------------------------------------------------------------------- #
def init_params(key):
    ks = list(jax.random.split(key, 26))
    nrm = lambda k, shape, s: (s * jax.random.normal(k, shape)).astype(jnp.float32)
    p = {}
    p['c1w'] = nrm(ks[0], (8, 1, 3), (1 * 3) ** -0.5)
    p['c1b'] = nrm(ks[1], (8,), 0.1)
    p['g1'] = 1.0 + nrm(ks[2], (8,), 0.1)
    p['b1'] = nrm(ks[3], (8,), 0.1)
    p['c2w'] = nrm(ks[4], (16, 8, 3), (8 * 3) ** -0.5)
    p['c2b'] = nrm(ks[5], (16,), 0.1)
    p['g2'] = 1.0 + nrm(ks[6], (16,), 0.1)
    p['b2'] = nrm(ks[7], (16,), 0.1)
    p['c3w'] = nrm(ks[8], (16, 16, 3), (16 * 3) ** -0.5)
    p['c3b'] = nrm(ks[9], (16,), 0.1)
    p['g3'] = 1.0 + nrm(ks[10], (16,), 0.1)
    p['b3'] = nrm(ks[11], (16,), 0.1)
    p['few'] = nrm(ks[12], (32, 112), 112 ** -0.5)     # Linear(112 -> 32) weight
    p['feb'] = nrm(ks[13], (32,), 0.1)
    p['fdw'] = nrm(ks[14], (112, 32), 32 ** -0.5)      # Linear(32 -> 112) weight
    p['fdb'] = nrm(ks[15], (112,), 0.1)
    p['d1w'] = nrm(ks[16], (16, 16, 3), (16 * 3) ** -0.5)  # ConvTranspose1d(16,16,3)
    p['d1b'] = nrm(ks[17], (16,), 0.1)
    p['g4'] = 1.0 + nrm(ks[18], (16,), 0.1)
    p['b4'] = nrm(ks[19], (16,), 0.1)
    p['d2w'] = nrm(ks[20], (16, 8, 3), (16 * 3) ** -0.5)   # ConvTranspose1d(16,8,3)
    p['d2b'] = nrm(ks[21], (8,), 0.1)
    p['g5'] = 1.0 + nrm(ks[22], (8,), 0.1)
    p['b5'] = nrm(ks[23], (8,), 0.1)
    p['d3w'] = nrm(ks[24], (8, 1, 3), (8 * 3) ** -0.5)     # ConvTranspose1d(8,1,3)
    p['d3b'] = nrm(ks[25], (1,), 0.1)
    return p


def ref_forward(x1, p):
    def conv1d(h, w, b):
        Bc, Ci, L = h.shape
        hp = jnp.pad(h, ((0, 0), (0, 0), (1, 1)))
        out = jnp.zeros((Bc, w.shape[0], L), jnp.float32)
        for k in range(3):
            out = out + jnp.einsum('oi,bil->bol', w[:, :, k], hp[:, :, k:k + L])
        return out + b[None, :, None]

    def bn(h, g, bt):
        mean = h.mean(axis=(0, 2), keepdims=True)
        var = ((h - mean) ** 2).mean(axis=(0, 2), keepdims=True)
        return g[None, :, None] * (h - mean) * jax.lax.rsqrt(var + BN_EPS) + bt[None, :, None]

    relu = lambda h: jnp.maximum(h, 0.0)
    maxp2 = lambda h: h.reshape(h.shape[0], h.shape[1], h.shape[2] // 2, 2).max(-1)
    avgp3 = lambda h: h.reshape(h.shape[0], h.shape[1], h.shape[2] // 3, 3).mean(-1)
    up = lambda h, s: jnp.repeat(h, s, axis=2)
    convT = lambda h, wt, b: conv1d(h, convT_to_conv(wt), b)

    h = x1[:, None, :]
    h = maxp2(relu(bn(conv1d(h, p['c1w'], p['c1b']), p['g1'], p['b1'])))
    h = maxp2(relu(bn(conv1d(h, p['c2w'], p['c2b']), p['g2'], p['b2'])))
    h = avgp3(relu(bn(conv1d(h, p['c3w'], p['c3b']), p['g3'], p['b3'])))
    B = h.shape[0]
    z = jnp.dot(h.reshape(B, -1), p['few'].T) + p['feb']
    h = (jnp.dot(z, p['fdw'].T) + p['fdb']).reshape(B, 16, 7)
    h = relu(bn(convT(up(h, 3), p['d1w'], p['d1b']), p['g4'], p['b4']))
    h = relu(bn(convT(up(h, 2), p['d2w'], p['d2b']), p['g5'], p['b5']))
    h = convT(up(h, 2), p['d3w'], p['d3b'])
    return h[:, 0, :], z


# --------------------------------------------------------------------------- #
if __name__ == "__main__":
    key = jax.random.PRNGKey(0)
    kx, kx2, kp = jax.random.split(key, 3)
    B = 2
    x1 = jax.random.normal(kx, (B, L_IN), dtype=jnp.float32)
    x2 = jax.random.normal(kx2, (B, 8), dtype=jnp.float32)   # unused (pretrain branch)
    params = init_params(kp)

    y, z = cnn1d_forward(x1, params, x2)
    jax.block_until_ready((y, z))
    assert y.shape == (B, L_IN) and z.shape == (B, Z_DIM)

    y_ref, z_ref = ref_forward(x1, params)
    assert jnp.allclose(z, z_ref, rtol=1e-2, atol=1e-2), "latent code mismatch"
    assert jnp.allclose(y, y_ref, rtol=1e-2, atol=1e-2), "decoder output mismatch"

    print("KERNEL_OK")
</pallas_src>

<mosaic_0001>
module attributes {stable_mosaic.version = 11 : i64} {
  func.func @kernel(%arg0: memref<1x168xf32, #tpu.memory_space<vmem>>, %arg1: memref<672x112xf32, #tpu.memory_space<vmem>>, %arg2: memref<7x42x2xf32, #tpu.memory_space<vmem>>, %arg3: memref<7x2x42xf32, #tpu.memory_space<vmem>>, %arg4: memref<1x168xf32, #tpu.memory_space<vmem>>, %arg5: memref<32x2xf32, #tpu.memory_space<vmem>>) attributes {dimension_semantics = [], scalar_prefetch = 0 : i64, scratch_operands = 0 : i64, tpu.core_type = #tpu.core_type<tc>} {
    %0 = tpu.iota {dimensions = array<i32: 1>} : vector<1x168xi32>
    %1 = arith.sitofp %0 : vector<1x168xi32> to vector<1x168xf32>
    %cst = arith.constant 8.400000e+01 : f32
    %2 = vector.broadcast %cst : f32 to vector<1x168xf32>
    %3 = arith.divf %1, %2 : vector<1x168xf32>
    %4 = math.floor %3 : vector<1x168xf32>
    %cst_0 = arith.constant 8.400000e+01 : f32
    %5 = vector.broadcast %cst_0 : f32 to vector<1x168xf32>
    %6 = arith.mulf %4, %5 : vector<1x168xf32>
    %7 = arith.subf %1, %6 : vector<1x168xf32>
    %cst_1 = arith.constant 5.000000e-01 : f32
    %8 = vector.broadcast %cst_1 : f32 to vector<1x168xf32>
    %9 = arith.cmpf ogt, %7, %8 : vector<1x168xf32>
    %10 = arith.extui %9 : vector<1x168xi1> to vector<1x168xi32>
    %11 = arith.sitofp %10 : vector<1x168xi32> to vector<1x168xf32>
    %cst_2 = arith.constant 8.250000e+01 : f32
    %12 = vector.broadcast %cst_2 : f32 to vector<1x168xf32>
    %13 = arith.cmpf olt, %7, %12 : vector<1x168xf32>
    %14 = arith.extui %13 : vector<1x168xi1> to vector<1x168xi32>
    %15 = arith.sitofp %14 : vector<1x168xi32> to vector<1x168xf32>
    %16 = tpu.iota {dimensions = array<i32: 1>} : vector<1x84xi32>
    %17 = arith.sitofp %16 : vector<1x84xi32> to vector<1x84xf32>
    %cst_3 = arith.constant 4.200000e+01 : f32
    %18 = vector.broadcast %cst_3 : f32 to vector<1x84xf32>
    %19 = arith.divf %17, %18 : vector<1x84xf32>
    %20 = math.floor %19 : vector<1x84xf32>
    %cst_4 = arith.constant 4.200000e+01 : f32
    %21 = vector.broadcast %cst_4 : f32 to vector<1x84xf32>
    %22 = arith.mulf %20, %21 : vector<1x84xf32>
    %23 = arith.subf %17, %22 : vector<1x84xf32>
    %cst_5 = arith.constant 5.000000e-01 : f32
    %24 = vector.broadcast %cst_5 : f32 to vector<1x84xf32>
    %25 = arith.cmpf ogt, %23, %24 : vector<1x84xf32>
    %26 = arith.extui %25 : vector<1x84xi1> to vector<1x84xi32>
    %27 = arith.sitofp %26 : vector<1x84xi32> to vector<1x84xf32>
    %cst_6 = arith.constant 4.050000e+01 : f32
    %28 = vector.broadcast %cst_6 : f32 to vector<1x84xf32>
    %29 = arith.cmpf olt, %23, %28 : vector<1x84xf32>
    %30 = arith.extui %29 : vector<1x84xi1> to vector<1x84xi32>
    %31 = arith.sitofp %30 : vector<1x84xi32> to vector<1x84xf32>
    %32 = tpu.iota {dimensions = array<i32: 1>} : vector<1x42xi32>
    %33 = arith.sitofp %32 : vector<1x42xi32> to vector<1x42xf32>
    %cst_7 = arith.constant 2.100000e+01 : f32
    %34 = vector.broadcast %cst_7 : f32 to vector<1x42xf32>
    %35 = arith.divf %33, %34 : vector<1x42xf32>
    %36 = math.floor %35 : vector<1x42xf32>
    %cst_8 = arith.constant 2.100000e+01 : f32
    %37 = vector.broadcast %cst_8 : f32 to vector<1x42xf32>
    %38 = arith.mulf %36, %37 : vector<1x42xf32>
    %39 = arith.subf %33, %38 : vector<1x42xf32>
    %cst_9 = arith.constant 5.000000e-01 : f32
    %40 = vector.broadcast %cst_9 : f32 to vector<1x42xf32>
    %41 = arith.cmpf ogt, %39, %40 : vector<1x42xf32>
    %42 = arith.extui %41 : vector<1x42xi1> to vector<1x42xi32>
    %43 = arith.sitofp %42 : vector<1x42xi32> to vector<1x42xf32>
    %cst_10 = arith.constant 1.950000e+01 : f32
    %44 = vector.broadcast %cst_10 : f32 to vector<1x42xf32>
    %45 = arith.cmpf olt, %39, %44 : vector<1x42xf32>
    %46 = arith.extui %45 : vector<1x42xi1> to vector<1x42xi32>
    %47 = arith.sitofp %46 : vector<1x42xi32> to vector<1x42xf32>
    %c0 = arith.constant 0 : index
    %c0_11 = arith.constant 0 : index
    %48 = vector.load %arg0[%c0, %c0_11] : memref<1x168xf32, #tpu.memory_space<vmem>>, vector<1x168xf32>
    %49 = vector.extract_strided_slice %48 {offsets = [0, 167], sizes = [1, 1], strides = [1, 1]} : vector<1x168xf32> to vector<1x1xf32>
    %50 = vector.extract_strided_slice %48 {offsets = [0, 0], sizes = [1, 167], strides = [1, 1]} : vector<1x168xf32> to vector<1x167xf32>
    %51 = tpu.concatenate %49, %50 in 1 : vector<1x1xf32>, vector<1x167xf32> -> vector<1x168xf32>
    %52 = arith.mulf %51, %11 : vector<1x168xf32>
    %53 = vector.extract_strided_slice %48 {offsets = [0, 1], sizes = [1, 167], strides = [1, 1]} : vector<1x168xf32> to vector<1x167xf32>
    %54 = vector.extract_strided_slice %48 {offsets = [0, 0], sizes = [1, 1], strides = [1, 1]} : vector<1x168xf32> to vector<1x1xf32>
    %55 = tpu.concatenate %53, %54 in 1 : vector<1x167xf32>, vector<1x1xf32> -> vector<1x168xf32>
    %56 = arith.mulf %55, %15 : vector<1x168xf32>
    %57 = tpu.concatenate %52, %48, %56 in 0 : vector<1x168xf32>, vector<1x168xf32>, vector<1x168xf32> -> vector<3x168xf32>
    %c0_12 = arith.constant 0 : index
    %c0_13 = arith.constant 0 : index
    %58 = vector.load %arg1[%c0_12, %c0_13] : memref<672x112xf32, #tpu.memory_space<vmem>>, vector<8x3xf32>
    %cst_14 = arith.constant dense<0.000000e+00> : vector<8x168xf32>
    %59 = tpu.matmul %58, %57, %cst_14 {dimension_numbers = #tpu.dot_dimension_numbers<[1], [0], [0], [1], [0, 0, 1, 1], [], []>} : vector<8x3xf32>, vector<3x168xf32>, vector<8x168xf32> -> vector<8x168xf32>
    %c8 = arith.constant 8 : index
    %c0_15 = arith.constant 0 : index
    %60 = vector.load %arg1[%c8, %c0_15] : memref<672x112xf32, #tpu.memory_space<vmem>>, vector<8x1xf32>
    %61 = vector.broadcast %60 : vector<8x1xf32> to vector<8x168xf32>
    %62 = arith.addf %59, %61 : vector<8x168xf32>
    %cst_16 = arith.constant dense<0.000000e+00> : vector<8xf32>
    %63 = vector.multi_reduction <add>, %62, %cst_16 [1] : vector<8x168xf32> to vector<8xf32>
    %64 = vector.shape_cast %63 : vector<8xf32> to vector<8x1xf32>
    %65 = arith.mulf %62, %62 : vector<8x168xf32>
    %cst_17 = arith.constant dense<0.000000e+00> : vector<8xf32>
    %66 = vector.multi_reduction <add>, %65, %cst_17 [1] : vector<8x168xf32> to vector<8xf32>
    %67 = vector.shape_cast %66 : vector<8xf32> to vector<8x1xf32>
    %cst_18 = arith.constant 0.00595238106 : f32
    %68 = vector.broadcast %cst_18 : f32 to vector<8x1xf32>
    %69 = arith.mulf %64, %68 : vector<8x1xf32>
    %cst_19 = arith.constant 0.00595238106 : f32
    %70 = vector.broadcast %cst_19 : f32 to vector<8x1xf32>
    %71 = arith.mulf %67, %70 : vector<8x1xf32>
    %72 = arith.mulf %69, %69 : vector<8x1xf32>
    %73 = arith.subf %71, %72 : vector<8x1xf32>
    %c16 = arith.constant 16 : index
    %c0_20 = arith.constant 0 : index
    %74 = vector.load %arg1[%c16, %c0_20] : memref<672x112xf32, #tpu.memory_space<vmem>>, vector<8x1xf32>
    %75 = vector.broadcast %69 : vector<8x1xf32> to vector<8x168xf32>
    %76 = arith.subf %62, %75 : vector<8x168xf32>
    %77 = vector.broadcast %74 : vector<8x1xf32> to vector<8x168xf32>
    %78 = arith.mulf %77, %76 : vector<8x168xf32>
    %cst_21 = arith.constant 9.99999974E-6 : f32
    %79 = vector.broadcast %cst_21 : f32 to vector<8x1xf32>
    %80 = arith.addf %73, %79 : vector<8x1xf32>
    %81 = math.rsqrt %80 : vector<8x1xf32>
    %82 = vector.broadcast %81 : vector<8x1xf32> to vector<8x168xf32>
    %83 = arith.mulf %78, %82 : vector<8x168xf32>
    %c24 = arith.constant 24 : index
    %c0_22 = arith.constant 0 : index
    %84 = vector.load %arg1[%c24, %c0_22] : memref<672x112xf32, #tpu.memory_space<vmem>>, vector<8x1xf32>
    %85 = vector.broadcast %84 : vector<8x1xf32> to vector<8x168xf32>
    %86 = arith.addf %83, %85 : vector<8x168xf32>
    %cst_23 = arith.constant 0.000000e+00 : f32
    %87 = vector.broadcast %cst_23 : f32 to vector<8x168xf32>
    %88 = arith.maximumf %86, %87 : vector<8x168xf32>
    %89 = vector.extract_strided_slice %88 {offsets = [0, 1], sizes = [8, 167], strides = [1, 1]} : vector<8x168xf32> to vector<8x167xf32>
    %90 = vector.extract_strided_slice %88 {offsets = [0, 0], sizes = [8, 1], strides = [1, 1]} : vector<8x168xf32> to vector<8x1xf32>
    %91 = tpu.concatenate %89, %90 in 1 : vector<8x167xf32>, vector<8x1xf32> -> vector<8x168xf32>
    %92 = arith.maximumf %88, %91 : vector<8x168xf32>
    %c464 = arith.constant 464 : index
    %c0_24 = arith.constant 0 : index
    %93 = vector.load %arg1[%c464, %c0_24] : memref<672x112xf32, #tpu.memory_space<vmem>>, vector<84x42xf32>
    %94 = vector.extract_strided_slice %92 {offsets = [0, 0], sizes = [8, 84], strides = [1, 1]} : vector<8x168xf32> to vector<8x84xf32>
    %cst_25 = arith.constant dense<0.000000e+00> : vector<8x42xf32>
    %95 = tpu.matmul %94, %93, %cst_25 {dimension_numbers = #tpu.dot_dimension_numbers<[1], [0], [0], [1], [0, 0, 1, 1], [], []>} : vector<8x84xf32>, vector<84x42xf32>, vector<8x42xf32> -> vector<8x42xf32>
    %96 = vector.extract_strided_slice %92 {offsets = [0, 84], sizes = [8, 84], strides = [1, 1]} : vector<8x168xf32> to vector<8x84xf32>
    %cst_26 = arith.constant dense<0.000000e+00> : vector<8x42xf32>
    %97 = tpu.matmul %96, %93, %cst_26 {dimension_numbers = #tpu.dot_dimension_numbers<[1], [0], [0], [1], [0, 0, 1, 1], [], []>} : vector<8x84xf32>, vector<84x42xf32>, vector<8x42xf32> -> vector<8x42xf32>
    %98 = tpu.concatenate %95, %97 in 1 : vector<8x42xf32>, vector<8x42xf32> -> vector<8x84xf32>
    %99 = vector.extract_strided_slice %98 {offsets = [0, 83], sizes = [8, 1], strides = [1, 1]} : vector<8x84xf32> to vector<8x1xf32>
    %100 = vector.extract_strided_slice %98 {offsets = [0, 0], sizes = [8, 83], strides = [1, 1]} : vector<8x84xf32> to vector<8x83xf32>
    %101 = tpu.concatenate %99, %100 in 1 : vector<8x1xf32>, vector<8x83xf32> -> vector<8x84xf32>
    %102 = vector.broadcast %27 : vector<1x84xf32> to vector<8x84xf32>
    %103 = arith.mulf %101, %102 : vector<8x84xf32>
    %104 = vector.extract_strided_slice %98 {offsets = [0, 1], sizes = [8, 83], strides = [1, 1]} : vector<8x84xf32> to vector<8x83xf32>
    %105 = vector.extract_strided_slice %98 {offsets = [0, 0], sizes = [8, 1], strides = [1, 1]} : vector<8x84xf32> to vector<8x1xf32>
    %106 = tpu.concatenate %104, %105 in 1 : vector<8x83xf32>, vector<8x1xf32> -> vector<8x84xf32>
    %107 = vector.broadcast %31 : vector<1x84xf32> to vector<8x84xf32>
    %108 = arith.mulf %106, %107 : vector<8x84xf32>
    %109 = tpu.concatenate %103, %98, %108 in 0 : vector<8x84xf32>, vector<8x84xf32>, vector<8x84xf32> -> vector<24x84xf32>
    %c32 = arith.constant 32 : index
    %c0_27 = arith.constant 0 : index
    %110 = vector.load %arg1[%c32, %c0_27] : memref<672x112xf32, #tpu.memory_space<vmem>>, vector<16x24xf32>
    %cst_28 = arith.constant dense<0.000000e+00> : vector<16x84xf32>
    %111 = tpu.matmul %110, %109, %cst_28 {dimension_numbers = #tpu.dot_dimension_numbers<[1], [0], [0], [1], [0, 0, 1, 1], [], []>} : vector<16x24xf32>, vector<24x84xf32>, vector<16x84xf32> -> vector<16x84xf32>
    %c48 = arith.constant 48 : index
    %c0_29 = arith.constant 0 : index
    %112 = vector.load %arg1[%c48, %c0_29] : memref<672x112xf32, #tpu.memory_space<vmem>>, vector<16x1xf32>
    %113 = vector.broadcast %112 : vector<16x1xf32> to vector<16x84xf32>
    %114 = arith.addf %111, %113 : vector<16x84xf32>
    %cst_30 = arith.constant dense<0.000000e+00> : vector<16xf32>
    %115 = vector.multi_reduction <add>, %114, %cst_30 [1] : vector<16x84xf32> to vector<16xf32>
    %116 = vector.shape_cast %115 : vector<16xf32> to vector<16x1xf32>
    %117 = arith.mulf %114, %114 : vector<16x84xf32>
    %cst_31 = arith.constant dense<0.000000e+00> : vector<16xf32>
    %118 = vector.multi_reduction <add>, %117, %cst_31 [1] : vector<16x84xf32> to vector<16xf32>
    %119 = vector.shape_cast %118 : vector<16xf32> to vector<16x1xf32>
    %cst_32 = arith.constant 0.0119047621 : f32
    %120 = vector.broadcast %cst_32 : f32 to vector<16x1xf32>
    %121 = arith.mulf %116, %120 : vector<16x1xf32>
    %cst_33 = arith.constant 0.0119047621 : f32
    %122 = vector.broadcast %cst_33 : f32 to vector<16x1xf32>
    %123 = arith.mulf %119, %122 : vector<16x1xf32>
    %124 = arith.mulf %121, %121 : vector<16x1xf32>
    %125 = arith.subf %123, %124 : vector<16x1xf32>
    %c64 = arith.constant 64 : index
    %c0_34 = arith.constant 0 : index
    %126 = vector.load %arg1[%c64, %c0_34] : memref<672x112xf32, #tpu.memory_space<vmem>>, vector<16x1xf32>
    %127 = vector.broadcast %121 : vector<16x1xf32> to vector<16x84xf32>
    %128 = arith.subf %114, %127 : vector<16x84xf32>
    %129 = vector.broadcast %126 : vector<16x1xf32> to vector<16x84xf32>
    %130 = arith.mulf %129, %128 : vector<16x84xf32>
    %cst_35 = arith.constant 9.99999974E-6 : f32
    %131 = vector.broadcast %cst_35 : f32 to vector<16x1xf32>
    %132 = arith.addf %125, %131 : vector<16x1xf32>
    %133 = math.rsqrt %132 : vector<16x1xf32>
    %134 = vector.broadcast %133 : vector<16x1xf32> to vector<16x84xf32>
    %135 = arith.mulf %130, %134 : vector<16x84xf32>
    %c80 = arith.constant 80 : index
    %c0_36 = arith.constant 0 : index
    %136 = vector.load %arg1[%c80, %c0_36] : memref<672x112xf32, #tpu.memory_space<vmem>>, vector<16x1xf32>
    %137 = vector.broadcast %136 : vector<16x1xf32> to vector<16x84xf32>
    %138 = arith.addf %135, %137 : vector<16x84xf32>
    %cst_37 = arith.constant 0.000000e+00 : f32
    %139 = vector.broadcast %cst_37 : f32 to vector<16x84xf32>
    %140 = arith.maximumf %138, %139 : vector<16x84xf32>
    %141 = vector.extract_strided_slice %140 {offsets = [0, 1], sizes = [16, 83], strides = [1, 1]} : vector<16x84xf32> to vector<16x83xf32>
    %142 = vector.extract_strided_slice %140 {offsets = [0, 0], sizes = [16, 1], strides = [1, 1]} : vector<16x84xf32> to vector<16x1xf32>
    %143 = tpu.concatenate %141, %142 in 1 : vector<16x83xf32>, vector<16x1xf32> -> vector<16x84xf32>
    %144 = arith.maximumf %140, %143 : vector<16x84xf32>
    %c552 = arith.constant 552 : index
    %c0_38 = arith.constant 0 : index
    %145 = vector.load %arg1[%c552, %c0_38] : memref<672x112xf32, #tpu.memory_space<vmem>>, vector<42x21xf32>
    %146 = vector.extract_strided_slice %144 {offsets = [0, 0], sizes = [16, 42], strides = [1, 1]} : vector<16x84xf32> to vector<16x42xf32>
    %cst_39 = arith.constant dense<0.000000e+00> : vector<16x21xf32>
    %147 = tpu.matmul %146, %145, %cst_39 {dimension_numbers = #tpu.dot_dimension_numbers<[1], [0], [0], [1], [0, 0, 1, 1], [], []>} : vector<16x42xf32>, vector<42x21xf32>, vector<16x21xf32> -> vector<16x21xf32>
    %148 = vector.extract_strided_slice %144 {offsets = [0, 42], sizes = [16, 42], strides = [1, 1]} : vector<16x84xf32> to vector<16x42xf32>
    %cst_40 = arith.constant dense<0.000000e+00> : vector<16x21xf32>
    %149 = tpu.matmul %148, %145, %cst_40 {dimension_numbers = #tpu.dot_dimension_numbers<[1], [0], [0], [1], [0, 0, 1, 1], [], []>} : vector<16x42xf32>, vector<42x21xf32>, vector<16x21xf32> -> vector<16x21xf32>
    %150 = tpu.concatenate %147, %149 in 1 : vector<16x21xf32>, vector<16x21xf32> -> vector<16x42xf32>
    %151 = vector.extract_strided_slice %150 {offsets = [0, 41], sizes = [16, 1], strides = [1, 1]} : vector<16x42xf32> to vector<16x1xf32>
    %152 = vector.extract_strided_slice %150 {offsets = [0, 0], sizes = [16, 41], strides = [1, 1]} : vector<16x42xf32> to vector<16x41xf32>
    %153 = tpu.concatenate %151, %152 in 1 : vector<16x1xf32>, vector<16x41xf32> -> vector<16x42xf32>
    %154 = vector.broadcast %43 : vector<1x42xf32> to vector<16x42xf32>
    %155 = arith.mulf %153, %154 : vector<16x42xf32>
    %156 = vector.extract_strided_slice %150 {offsets = [0, 1], sizes = [16, 41], strides = [1, 1]} : vector<16x42xf32> to vector<16x41xf32>
    %157 = vector.extract_strided_slice %150 {offsets = [0, 0], sizes = [16, 1], strides = [1, 1]} : vector<16x42xf32> to vector<16x1xf32>
    %158 = tpu.concatenate %156, %157 in 1 : vector<16x41xf32>, vector<16x1xf32> -> vector<16x42xf32>
    %159 = vector.broadcast %47 : vector<1x42xf32> to vector<16x42xf32>
    %160 = arith.mulf %158, %159 : vector<16x42xf32>
    %161 = tpu.concatenate %155, %150, %160 in 0 : vector<16x42xf32>, vector<16x42xf32>, vector<16x42xf32> -> vector<48x42xf32>
    %c96 = arith.constant 96 : index
    %c0_41 = arith.constant 0 : index
    %162 = vector.load %arg1[%c96, %c0_41] : memref<672x112xf32, #tpu.memory_space<vmem>>, vector<16x48xf32>
    %cst_42 = arith.constant dense<0.000000e+00> : vector<16x42xf32>
    %163 = tpu.matmul %162, %161, %cst_42 {dimension_numbers = #tpu.dot_dimension_numbers<[1], [0], [0], [1], [0, 0, 1, 1], [], []>} : vector<16x48xf32>, vector<48x42xf32>, vector<16x42xf32> -> vector<16x42xf32>
    %c112 = arith.constant 112 : index
    %c0_43 = arith.constant 0 : index
    %164 = vector.load %arg1[%c112, %c0_43] : memref<672x112xf32, #tpu.memory_space<vmem>>, vector<16x1xf32>
    %165 = vector.broadcast %164 : vector<16x1xf32> to vector<16x42xf32>
    %166 = arith.addf %163, %165 : vector<16x42xf32>
    %cst_44 = arith.constant dense<0.000000e+00> : vector<16xf32>
    %167 = vector.multi_reduction <add>, %166, %cst_44 [1] : vector<16x42xf32> to vector<16xf32>
    %168 = vector.shape_cast %167 : vector<16xf32> to vector<16x1xf32>
    %169 = arith.mulf %166, %166 : vector<16x42xf32>
    %cst_45 = arith.constant dense<0.000000e+00> : vector<16xf32>
    %170 = vector.multi_reduction <add>, %169, %cst_45 [1] : vector<16x42xf32> to vector<16xf32>
    %171 = vector.shape_cast %170 : vector<16xf32> to vector<16x1xf32>
    %cst_46 = arith.constant 0.0238095243 : f32
    %172 = vector.broadcast %cst_46 : f32 to vector<16x1xf32>
    %173 = arith.mulf %168, %172 : vector<16x1xf32>
    %cst_47 = arith.constant 0.0238095243 : f32
    %174 = vector.broadcast %cst_47 : f32 to vector<16x1xf32>
    %175 = arith.mulf %171, %174 : vector<16x1xf32>
    %176 = arith.mulf %173, %173 : vector<16x1xf32>
    %177 = arith.subf %175, %176 : vector<16x1xf32>
    %c128 = arith.constant 128 : index
    %c0_48 = arith.constant 0 : index
    %178 = vector.load %arg1[%c128, %c0_48] : memref<672x112xf32, #tpu.memory_space<vmem>>, vector<16x1xf32>
    %179 = vector.broadcast %173 : vector<16x1xf32> to vector<16x42xf32>
    %180 = arith.subf %166, %179 : vector<16x42xf32>
    %181 = vector.broadcast %178 : vector<16x1xf32> to vector<16x42xf32>
    %182 = arith.mulf %181, %180 : vector<16x42xf32>
    %cst_49 = arith.constant 9.99999974E-6 : f32
    %183 = vector.broadcast %cst_49 : f32 to vector<16x1xf32>
    %184 = arith.addf %177, %183 : vector<16x1xf32>
    %185 = math.rsqrt %184 : vector<16x1xf32>
    %186 = vector.broadcast %185 : vector<16x1xf32> to vector<16x42xf32>
    %187 = arith.mulf %182, %186 : vector<16x42xf32>
    %c144 = arith.constant 144 : index
    %c0_50 = arith.constant 0 : index
    %188 = vector.load %arg1[%c144, %c0_50] : memref<672x112xf32, #tpu.memory_space<vmem>>, vector<16x1xf32>
    %189 = vector.broadcast %188 : vector<16x1xf32> to vector<16x42xf32>
    %190 = arith.addf %187, %189 : vector<16x42xf32>
    %cst_51 = arith.constant 0.000000e+00 : f32
    %191 = vector.broadcast %cst_51 : f32 to vector<16x42xf32>
    %192 = arith.maximumf %190, %191 : vector<16x42xf32>
    %c160 = arith.constant 160 : index
    %c0_52 = arith.constant 0 : index
    %193 = vector.load %arg1[%c160, %c0_52] : memref<672x112xf32, #tpu.memory_space<vmem>>, vector<32x112xf32>
    %c0_53 = arith.constant 0 : index
    %c0_54 = arith.constant 0 : index
    %c0_55 = arith.constant 0 : index
    %194 = vector.load %arg2[%c0_53, %c0_54, %c0_55] : memref<7x42x2xf32, #tpu.memory_space<vmem>>, vector<1x42x2xf32>
    %195 = vector.shape_cast %194 : vector<1x42x2xf32> to vector<42x2xf32>
    %cst_56 = arith.constant dense<0.000000e+00> : vector<16x2xf32>
    %196 = tpu.matmul %192, %195, %cst_56 {dimension_numbers = #tpu.dot_dimension_numbers<[1], [0], [0], [1], [0, 0, 1, 1], [], []>} : vector<16x42xf32>, vector<42x2xf32>, vector<16x2xf32> -> vector<16x2xf32>
    %197 = vector.extract_strided_slice %193 {offsets = [0, 0], sizes = [32, 16], strides = [1, 1]} : vector<32x112xf32> to vector<32x16xf32>
    %cst_57 = arith.constant dense<0.000000e+00> : vector<32x2xf32>
    %198 = tpu.matmul %197, %196, %cst_57 {dimension_numbers = #tpu.dot_dimension_numbers<[1], [0], [0], [1], [0, 0, 1, 1], [], []>} : vector<32x16xf32>, vector<16x2xf32>, vector<32x2xf32> -> vector<32x2xf32>
    %c1 = arith.constant 1 : index
    %c0_58 = arith.constant 0 : index
    %c0_59 = arith.constant 0 : index
    %199 = vector.load %arg2[%c1, %c0_58, %c0_59] : memref<7x42x2xf32, #tpu.memory_space<vmem>>, vector<1x42x2xf32>
    %200 = vector.shape_cast %199 : vector<1x42x2xf32> to vector<42x2xf32>
    %cst_60 = arith.constant dense<0.000000e+00> : vector<16x2xf32>
    %201 = tpu.matmul %192, %200, %cst_60 {dimension_numbers = #tpu.dot_dimension_numbers<[1], [0], [0], [1], [0, 0, 1, 1], [], []>} : vector<16x42xf32>, vector<42x2xf32>, vector<16x2xf32> -> vector<16x2xf32>
    %202 = vector.extract_strided_slice %193 {offsets = [0, 16], sizes = [32, 16], strides = [1, 1]} : vector<32x112xf32> to vector<32x16xf32>
    %cst_61 = arith.constant dense<0.000000e+00> : vector<32x2xf32>
    %203 = tpu.matmul %202, %201, %cst_61 {dimension_numbers = #tpu.dot_dimension_numbers<[1], [0], [0], [1], [0, 0, 1, 1], [], []>} : vector<32x16xf32>, vector<16x2xf32>, vector<32x2xf32> -> vector<32x2xf32>
    %204 = arith.addf %198, %203 : vector<32x2xf32>
    %c2 = arith.constant 2 : index
    %c0_62 = arith.constant 0 : index
    %c0_63 = arith.constant 0 : index
    %205 = vector.load %arg2[%c2, %c0_62, %c0_63] : memref<7x42x2xf32, #tpu.memory_space<vmem>>, vector<1x42x2xf32>
    %206 = vector.shape_cast %205 : vector<1x42x2xf32> to vector<42x2xf32>
    %cst_64 = arith.constant dense<0.000000e+00> : vector<16x2xf32>
    %207 = tpu.matmul %192, %206, %cst_64 {dimension_numbers = #tpu.dot_dimension_numbers<[1], [0], [0], [1], [0, 0, 1, 1], [], []>} : vector<16x42xf32>, vector<42x2xf32>, vector<16x2xf32> -> vector<16x2xf32>
    %208 = vector.extract_strided_slice %193 {offsets = [0, 32], sizes = [32, 16], strides = [1, 1]} : vector<32x112xf32> to vector<32x16xf32>
    %cst_65 = arith.constant dense<0.000000e+00> : vector<32x2xf32>
    %209 = tpu.matmul %208, %207, %cst_65 {dimension_numbers = #tpu.dot_dimension_numbers<[1], [0], [0], [1], [0, 0, 1, 1], [], []>} : vector<32x16xf32>, vector<16x2xf32>, vector<32x2xf32> -> vector<32x2xf32>
    %210 = arith.addf %204, %209 : vector<32x2xf32>
    %c3 = arith.constant 3 : index
    %c0_66 = arith.constant 0 : index
    %c0_67 = arith.constant 0 : index
    %211 = vector.load %arg2[%c3, %c0_66, %c0_67] : memref<7x42x2xf32, #tpu.memory_space<vmem>>, vector<1x42x2xf32>
    %212 = vector.shape_cast %211 : vector<1x42x2xf32> to vector<42x2xf32>
    %cst_68 = arith.constant dense<0.000000e+00> : vector<16x2xf32>
    %213 = tpu.matmul %192, %212, %cst_68 {dimension_numbers = #tpu.dot_dimension_numbers<[1], [0], [0], [1], [0, 0, 1, 1], [], []>} : vector<16x42xf32>, vector<42x2xf32>, vector<16x2xf32> -> vector<16x2xf32>
    %214 = vector.extract_strided_slice %193 {offsets = [0, 48], sizes = [32, 16], strides = [1, 1]} : vector<32x112xf32> to vector<32x16xf32>
    %cst_69 = arith.constant dense<0.000000e+00> : vector<32x2xf32>
    %215 = tpu.matmul %214, %213, %cst_69 {dimension_numbers = #tpu.dot_dimension_numbers<[1], [0], [0], [1], [0, 0, 1, 1], [], []>} : vector<32x16xf32>, vector<16x2xf32>, vector<32x2xf32> -> vector<32x2xf32>
    %216 = arith.addf %210, %215 : vector<32x2xf32>
    %c4 = arith.constant 4 : index
    %c0_70 = arith.constant 0 : index
    %c0_71 = arith.constant 0 : index
    %217 = vector.load %arg2[%c4, %c0_70, %c0_71] : memref<7x42x2xf32, #tpu.memory_space<vmem>>, vector<1x42x2xf32>
    %218 = vector.shape_cast %217 : vector<1x42x2xf32> to vector<42x2xf32>
    %cst_72 = arith.constant dense<0.000000e+00> : vector<16x2xf32>
    %219 = tpu.matmul %192, %218, %cst_72 {dimension_numbers = #tpu.dot_dimension_numbers<[1], [0], [0], [1], [0, 0, 1, 1], [], []>} : vector<16x42xf32>, vector<42x2xf32>, vector<16x2xf32> -> vector<16x2xf32>
    %220 = vector.extract_strided_slice %193 {offsets = [0, 64], sizes = [32, 16], strides = [1, 1]} : vector<32x112xf32> to vector<32x16xf32>
    %cst_73 = arith.constant dense<0.000000e+00> : vector<32x2xf32>
    %221 = tpu.matmul %220, %219, %cst_73 {dimension_numbers = #tpu.dot_dimension_numbers<[1], [0], [0], [1], [0, 0, 1, 1], [], []>} : vector<32x16xf32>, vector<16x2xf32>, vector<32x2xf32> -> vector<32x2xf32>
    %222 = arith.addf %216, %221 : vector<32x2xf32>
    %c5 = arith.constant 5 : index
    %c0_74 = arith.constant 0 : index
    %c0_75 = arith.constant 0 : index
    %223 = vector.load %arg2[%c5, %c0_74, %c0_75] : memref<7x42x2xf32, #tpu.memory_space<vmem>>, vector<1x42x2xf32>
    %224 = vector.shape_cast %223 : vector<1x42x2xf32> to vector<42x2xf32>
    %cst_76 = arith.constant dense<0.000000e+00> : vector<16x2xf32>
    %225 = tpu.matmul %192, %224, %cst_76 {dimension_numbers = #tpu.dot_dimension_numbers<[1], [0], [0], [1], [0, 0, 1, 1], [], []>} : vector<16x42xf32>, vector<42x2xf32>, vector<16x2xf32> -> vector<16x2xf32>
    %226 = vector.extract_strided_slice %193 {offsets = [0, 80], sizes = [32, 16], strides = [1, 1]} : vector<32x112xf32> to vector<32x16xf32>
    %cst_77 = arith.constant dense<0.000000e+00> : vector<32x2xf32>
    %227 = tpu.matmul %226, %225, %cst_77 {dimension_numbers = #tpu.dot_dimension_numbers<[1], [0], [0], [1], [0, 0, 1, 1], [], []>} : vector<32x16xf32>, vector<16x2xf32>, vector<32x2xf32> -> vector<32x2xf32>
    %228 = arith.addf %222, %227 : vector<32x2xf32>
    %c6 = arith.constant 6 : index
    %c0_78 = arith.constant 0 : index
    %c0_79 = arith.constant 0 : index
    %229 = vector.load %arg2[%c6, %c0_78, %c0_79] : memref<7x42x2xf32, #tpu.memory_space<vmem>>, vector<1x42x2xf32>
    %230 = vector.shape_cast %229 : vector<1x42x2xf32> to vector<42x2xf32>
    %cst_80 = arith.constant dense<0.000000e+00> : vector<16x2xf32>
    %231 = tpu.matmul %192, %230, %cst_80 {dimension_numbers = #tpu.dot_dimension_numbers<[1], [0], [0], [1], [0, 0, 1, 1], [], []>} : vector<16x42xf32>, vector<42x2xf32>, vector<16x2xf32> -> vector<16x2xf32>
    %232 = vector.extract_strided_slice %193 {offsets = [0, 96], sizes = [32, 16], strides = [1, 1]} : vector<32x112xf32> to vector<32x16xf32>
    %cst_81 = arith.constant dense<0.000000e+00> : vector<32x2xf32>
    %233 = tpu.matmul %232, %231, %cst_81 {dimension_numbers = #tpu.dot_dimension_numbers<[1], [0], [0], [1], [0, 0, 1, 1], [], []>} : vector<32x16xf32>, vector<16x2xf32>, vector<32x2xf32> -> vector<32x2xf32>
    %234 = arith.addf %228, %233 : vector<32x2xf32>
    %c192 = arith.constant 192 : index
    %c0_82 = arith.constant 0 : index
    %235 = vector.load %arg1[%c192, %c0_82] : memref<672x112xf32, #tpu.memory_space<vmem>>, vector<32x1xf32>
    %236 = vector.broadcast %235 : vector<32x1xf32> to vector<32x2xf32>
    %237 = arith.addf %234, %236 : vector<32x2xf32>
    %c224 = arith.constant 224 : index
    %c0_83 = arith.constant 0 : index
    %238 = vector.load %arg1[%c224, %c0_83] : memref<672x112xf32, #tpu.memory_space<vmem>>, vector<112x32xf32>
    %cst_84 = arith.constant dense<0.000000e+00> : vector<112x2xf32>
    %239 = tpu.matmul %238, %237, %cst_84 {dimension_numbers = #tpu.dot_dimension_numbers<[1], [0], [0], [1], [0, 0, 1, 1], [], []>} : vector<112x32xf32>, vector<32x2xf32>, vector<112x2xf32> -> vector<112x2xf32>
    %c336 = arith.constant 336 : index
    %c0_85 = arith.constant 0 : index
    %240 = vector.load %arg1[%c336, %c0_85] : memref<672x112xf32, #tpu.memory_space<vmem>>, vector<16x7xf32>
    %241 = vector.extract_strided_slice %239 {offsets = [0, 0], sizes = [16, 2], strides = [1, 1]} : vector<112x2xf32> to vector<16x2xf32>
    %242 = vector.extract_strided_slice %240 {offsets = [0, 0], sizes = [16, 1], strides = [1, 1]} : vector<16x7xf32> to vector<16x1xf32>
    %243 = vector.broadcast %242 : vector<16x1xf32> to vector<16x2xf32>
    %244 = arith.addf %241, %243 : vector<16x2xf32>
    %c0_86 = arith.constant 0 : index
    %c0_87 = arith.constant 0 : index
    %c0_88 = arith.constant 0 : index
    %245 = vector.load %arg3[%c0_86, %c0_87, %c0_88] : memref<7x2x42xf32, #tpu.memory_space<vmem>>, vector<1x2x42xf32>
    %246 = vector.shape_cast %245 : vector<1x2x42xf32> to vector<2x42xf32>
    %cst_89 = arith.constant dense<0.000000e+00> : vector<16x42xf32>
    %247 = tpu.matmul %244, %246, %cst_89 {dimension_numbers = #tpu.dot_dimension_numbers<[1], [0], [0], [1], [0, 0, 1, 1], [], []>} : vector<16x2xf32>, vector<2x42xf32>, vector<16x42xf32> -> vector<16x42xf32>
    %248 = vector.extract_strided_slice %239 {offsets = [16, 0], sizes = [16, 2], strides = [1, 1]} : vector<112x2xf32> to vector<16x2xf32>
    %249 = vector.extract_strided_slice %240 {offsets = [0, 1], sizes = [16, 1], strides = [1, 1]} : vector<16x7xf32> to vector<16x1xf32>
    %250 = vector.broadcast %249 : vector<16x1xf32> to vector<16x2xf32>
    %251 = arith.addf %248, %250 : vector<16x2xf32>
    %c1_90 = arith.constant 1 : index
    %c0_91 = arith.constant 0 : index
    %c0_92 = arith.constant 0 : index
    %252 = vector.load %arg3[%c1_90, %c0_91, %c0_92] : memref<7x2x42xf32, #tpu.memory_space<vmem>>, vector<1x2x42xf32>
    %253 = vector.shape_cast %252 : vector<1x2x42xf32> to vector<2x42xf32>
    %cst_93 = arith.constant dense<0.000000e+00> : vector<16x42xf32>
    %254 = tpu.matmul %251, %253, %cst_93 {dimension_numbers = #tpu.dot_dimension_numbers<[1], [0], [0], [1], [0, 0, 1, 1], [], []>} : vector<16x2xf32>, vector<2x42xf32>, vector<16x42xf32> -> vector<16x42xf32>
    %255 = arith.addf %247, %254 : vector<16x42xf32>
    %256 = vector.extract_strided_slice %239 {offsets = [32, 0], sizes = [16, 2], strides = [1, 1]} : vector<112x2xf32> to vector<16x2xf32>
    %257 = vector.extract_strided_slice %240 {offsets = [0, 2], sizes = [16, 1], strides = [1, 1]} : vector<16x7xf32> to vector<16x1xf32>
    %258 = vector.broadcast %257 : vector<16x1xf32> to vector<16x2xf32>
    %259 = arith.addf %256, %258 : vector<16x2xf32>
    %c2_94 = arith.constant 2 : index
    %c0_95 = arith.constant 0 : index
    %c0_96 = arith.constant 0 : index
    %260 = vector.load %arg3[%c2_94, %c0_95, %c0_96] : memref<7x2x42xf32, #tpu.memory_space<vmem>>, vector<1x2x42xf32>
    %261 = vector.shape_cast %260 : vector<1x2x42xf32> to vector<2x42xf32>
    %cst_97 = arith.constant dense<0.000000e+00> : vector<16x42xf32>
    %262 = tpu.matmul %259, %261, %cst_97 {dimension_numbers = #tpu.dot_dimension_numbers<[1], [0], [0], [1], [0, 0, 1, 1], [], []>} : vector<16x2xf32>, vector<2x42xf32>, vector<16x42xf32> -> vector<16x42xf32>
    %263 = arith.addf %255, %262 : vector<16x42xf32>
    %264 = vector.extract_strided_slice %239 {offsets = [48, 0], sizes = [16, 2], strides = [1, 1]} : vector<112x2xf32> to vector<16x2xf32>
    %265 = vector.extract_strided_slice %240 {offsets = [0, 3], sizes = [16, 1], strides = [1, 1]} : vector<16x7xf32> to vector<16x1xf32>
    %266 = vector.broadcast %265 : vector<16x1xf32> to vector<16x2xf32>
    %267 = arith.addf %264, %266 : vector<16x2xf32>
    %c3_98 = arith.constant 3 : index
    %c0_99 = arith.constant 0 : index
    %c0_100 = arith.constant 0 : index
    %268 = vector.load %arg3[%c3_98, %c0_99, %c0_100] : memref<7x2x42xf32, #tpu.memory_space<vmem>>, vector<1x2x42xf32>
    %269 = vector.shape_cast %268 : vector<1x2x42xf32> to vector<2x42xf32>
    %cst_101 = arith.constant dense<0.000000e+00> : vector<16x42xf32>
    %270 = tpu.matmul %267, %269, %cst_101 {dimension_numbers = #tpu.dot_dimension_numbers<[1], [0], [0], [1], [0, 0, 1, 1], [], []>} : vector<16x2xf32>, vector<2x42xf32>, vector<16x42xf32> -> vector<16x42xf32>
    %271 = arith.addf %263, %270 : vector<16x42xf32>
    %272 = vector.extract_strided_slice %239 {offsets = [64, 0], sizes = [16, 2], strides = [1, 1]} : vector<112x2xf32> to vector<16x2xf32>
    %273 = vector.extract_strided_slice %240 {offsets = [0, 4], sizes = [16, 1], strides = [1, 1]} : vector<16x7xf32> to vector<16x1xf32>
    %274 = vector.broadcast %273 : vector<16x1xf32> to vector<16x2xf32>
    %275 = arith.addf %272, %274 : vector<16x2xf32>
    %c4_102 = arith.constant 4 : index
    %c0_103 = arith.constant 0 : index
    %c0_104 = arith.constant 0 : index
    %276 = vector.load %arg3[%c4_102, %c0_103, %c0_104] : memref<7x2x42xf32, #tpu.memory_space<vmem>>, vector<1x2x42xf32>
    %277 = vector.shape_cast %276 : vector<1x2x42xf32> to vector<2x42xf32>
    %cst_105 = arith.constant dense<0.000000e+00> : vector<16x42xf32>
    %278 = tpu.matmul %275, %277, %cst_105 {dimension_numbers = #tpu.dot_dimension_numbers<[1], [0], [0], [1], [0, 0, 1, 1], [], []>} : vector<16x2xf32>, vector<2x42xf32>, vector<16x42xf32> -> vector<16x42xf32>
    %279 = arith.addf %271, %278 : vector<16x42xf32>
    %280 = vector.extract_strided_slice %239 {offsets = [80, 0], sizes = [16, 2], strides = [1, 1]} : vector<112x2xf32> to vector<16x2xf32>
    %281 = vector.extract_strided_slice %240 {offsets = [0, 5], sizes = [16, 1], strides = [1, 1]} : vector<16x7xf32> to vector<16x1xf32>
    %282 = vector.broadcast %281 : vector<16x1xf32> to vector<16x2xf32>
    %283 = arith.addf %280, %282 : vector<16x2xf32>
    %c5_106 = arith.constant 5 : index
    %c0_107 = arith.constant 0 : index
    %c0_108 = arith.constant 0 : index
    %284 = vector.load %arg3[%c5_106, %c0_107, %c0_108] : memref<7x2x42xf32, #tpu.memory_space<vmem>>, vector<1x2x42xf32>
    %285 = vector.shape_cast %284 : vector<1x2x42xf32> to vector<2x42xf32>
    %cst_109 = arith.constant dense<0.000000e+00> : vector<16x42xf32>
    %286 = tpu.matmul %283, %285, %cst_109 {dimension_numbers = #tpu.dot_dimension_numbers<[1], [0], [0], [1], [0, 0, 1, 1], [], []>} : vector<16x2xf32>, vector<2x42xf32>, vector<16x42xf32> -> vector<16x42xf32>
    %287 = arith.addf %279, %286 : vector<16x42xf32>
    %288 = vector.extract_strided_slice %239 {offsets = [96, 0], sizes = [16, 2], strides = [1, 1]} : vector<112x2xf32> to vector<16x2xf32>
    %289 = vector.extract_strided_slice %240 {offsets = [0, 6], sizes = [16, 1], strides = [1, 1]} : vector<16x7xf32> to vector<16x1xf32>
    %290 = vector.broadcast %289 : vector<16x1xf32> to vector<16x2xf32>
    %291 = arith.addf %288, %290 : vector<16x2xf32>
    %c6_110 = arith.constant 6 : index
    %c0_111 = arith.constant 0 : index
    %c0_112 = arith.constant 0 : index
    %292 = vector.load %arg3[%c6_110, %c0_111, %c0_112] : memref<7x2x42xf32, #tpu.memory_space<vmem>>, vector<1x2x42xf32>
    %293 = vector.shape_cast %292 : vector<1x2x42xf32> to vector<2x42xf32>
    %cst_113 = arith.constant dense<0.000000e+00> : vector<16x42xf32>
    %294 = tpu.matmul %291, %293, %cst_113 {dimension_numbers = #tpu.dot_dimension_numbers<[1], [0], [0], [1], [0, 0, 1, 1], [], []>} : vector<16x2xf32>, vector<2x42xf32>, vector<16x42xf32> -> vector<16x42xf32>
    %295 = arith.addf %287, %294 : vector<16x42xf32>
    %296 = vector.extract_strided_slice %295 {offsets = [0, 41], sizes = [16, 1], strides = [1, 1]} : vector<16x42xf32> to vector<16x1xf32>
    %297 = vector.extract_strided_slice %295 {offsets = [0, 0], sizes = [16, 41], strides = [1, 1]} : vector<16x42xf32> to vector<16x41xf32>
    %298 = tpu.concatenate %296, %297 in 1 : vector<16x1xf32>, vector<16x41xf32> -> vector<16x42xf32>
    %299 = vector.broadcast %43 : vector<1x42xf32> to vector<16x42xf32>
    %300 = arith.mulf %298, %299 : vector<16x42xf32>
    %301 = vector.extract_strided_slice %295 {offsets = [0, 1], sizes = [16, 41], strides = [1, 1]} : vector<16x42xf32> to vector<16x41xf32>
    %302 = vector.extract_strided_slice %295 {offsets = [0, 0], sizes = [16, 1], strides = [1, 1]} : vector<16x42xf32> to vector<16x1xf32>
    %303 = tpu.concatenate %301, %302 in 1 : vector<16x41xf32>, vector<16x1xf32> -> vector<16x42xf32>
    %304 = vector.broadcast %47 : vector<1x42xf32> to vector<16x42xf32>
    %305 = arith.mulf %303, %304 : vector<16x42xf32>
    %306 = tpu.concatenate %300, %295, %305 in 0 : vector<16x42xf32>, vector<16x42xf32>, vector<16x42xf32> -> vector<48x42xf32>
    %c352 = arith.constant 352 : index
    %c0_114 = arith.constant 0 : index
    %307 = vector.load %arg1[%c352, %c0_114] : memref<672x112xf32, #tpu.memory_space<vmem>>, vector<16x48xf32>
    %cst_115 = arith.constant dense<0.000000e+00> : vector<16x42xf32>
    %308 = tpu.matmul %307, %306, %cst_115 {dimension_numbers = #tpu.dot_dimension_numbers<[1], [0], [0], [1], [0, 0, 1, 1], [], []>} : vector<16x48xf32>, vector<48x42xf32>, vector<16x42xf32> -> vector<16x42xf32>
    %c368 = arith.constant 368 : index
    %c0_116 = arith.constant 0 : index
    %309 = vector.load %arg1[%c368, %c0_116] : memref<672x112xf32, #tpu.memory_space<vmem>>, vector<16x1xf32>
    %310 = vector.broadcast %309 : vector<16x1xf32> to vector<16x42xf32>
    %311 = arith.addf %308, %310 : vector<16x42xf32>
    %cst_117 = arith.constant dense<0.000000e+00> : vector<16xf32>
    %312 = vector.multi_reduction <add>, %311, %cst_117 [1] : vector<16x42xf32> to vector<16xf32>
    %313 = vector.shape_cast %312 : vector<16xf32> to vector<16x1xf32>
    %314 = arith.mulf %311, %311 : vector<16x42xf32>
    %cst_118 = arith.constant dense<0.000000e+00> : vector<16xf32>
    %315 = vector.multi_reduction <add>, %314, %cst_118 [1] : vector<16x42xf32> to vector<16xf32>
    %316 = vector.shape_cast %315 : vector<16xf32> to vector<16x1xf32>
    %cst_119 = arith.constant 0.0238095243 : f32
    %317 = vector.broadcast %cst_119 : f32 to vector<16x1xf32>
    %318 = arith.mulf %313, %317 : vector<16x1xf32>
    %cst_120 = arith.constant 0.0238095243 : f32
    %319 = vector.broadcast %cst_120 : f32 to vector<16x1xf32>
    %320 = arith.mulf %316, %319 : vector<16x1xf32>
    %321 = arith.mulf %318, %318 : vector<16x1xf32>
    %322 = arith.subf %320, %321 : vector<16x1xf32>
    %c384 = arith.constant 384 : index
    %c0_121 = arith.constant 0 : index
    %323 = vector.load %arg1[%c384, %c0_121] : memref<672x112xf32, #tpu.memory_space<vmem>>, vector<16x1xf32>
    %324 = vector.broadcast %318 : vector<16x1xf32> to vector<16x42xf32>
    %325 = arith.subf %311, %324 : vector<16x42xf32>
    %326 = vector.broadcast %323 : vector<16x1xf32> to vector<16x42xf32>
    %327 = arith.mulf %326, %325 : vector<16x42xf32>
    %cst_122 = arith.constant 9.99999974E-6 : f32
    %328 = vector.broadcast %cst_122 : f32 to vector<16x1xf32>
    %329 = arith.addf %322, %328 : vector<16x1xf32>
    %330 = math.rsqrt %329 : vector<16x1xf32>
    %331 = vector.broadcast %330 : vector<16x1xf32> to vector<16x42xf32>
    %332 = arith.mulf %327, %331 : vector<16x42xf32>
    %c400 = arith.constant 400 : index
    %c0_123 = arith.constant 0 : index
    %333 = vector.load %arg1[%c400, %c0_123] : memref<672x112xf32, #tpu.memory_space<vmem>>, vector<16x1xf32>
    %334 = vector.broadcast %333 : vector<16x1xf32> to vector<16x42xf32>
    %335 = arith.addf %332, %334 : vector<16x42xf32>
    %cst_124 = arith.constant 0.000000e+00 : f32
    %336 = vector.broadcast %cst_124 : f32 to vector<16x42xf32>
    %337 = arith.maximumf %335, %336 : vector<16x42xf32>
    %c600 = arith.constant 600 : index
    %c0_125 = arith.constant 0 : index
    %338 = vector.load %arg1[%c600, %c0_125] : memref<672x112xf32, #tpu.memory_space<vmem>>, vector<21x42xf32>
    %339 = vector.extract_strided_slice %337 {offsets = [0, 0], sizes = [16, 21], strides = [1, 1]} : vector<16x42xf32> to vector<16x21xf32>
    %cst_126 = arith.constant dense<0.000000e+00> : vector<16x42xf32>
    %340 = tpu.matmul %339, %338, %cst_126 {dimension_numbers = #tpu.dot_dimension_numbers<[1], [0], [0], [1], [0, 0, 1, 1], [], []>} : vector<16x21xf32>, vector<21x42xf32>, vector<16x42xf32> -> vector<16x42xf32>
    %341 = vector.extract_strided_slice %337 {offsets = [0, 21], sizes = [16, 21], strides = [1, 1]} : vector<16x42xf32> to vector<16x21xf32>
    %cst_127 = arith.constant dense<0.000000e+00> : vector<16x42xf32>
    %342 = tpu.matmul %341, %338, %cst_127 {dimension_numbers = #tpu.dot_dimension_numbers<[1], [0], [0], [1], [0, 0, 1, 1], [], []>} : vector<16x21xf32>, vector<21x42xf32>, vector<16x42xf32> -> vector<16x42xf32>
    %343 = tpu.concatenate %340, %342 in 1 : vector<16x42xf32>, vector<16x42xf32> -> vector<16x84xf32>
    %344 = vector.extract_strided_slice %343 {offsets = [0, 83], sizes = [16, 1], strides = [1, 1]} : vector<16x84xf32> to vector<16x1xf32>
    %345 = vector.extract_strided_slice %343 {offsets = [0, 0], sizes = [16, 83], strides = [1, 1]} : vector<16x84xf32> to vector<16x83xf32>
    %346 = tpu.concatenate %344, %345 in 1 : vector<16x1xf32>, vector<16x83xf32> -> vector<16x84xf32>
    %347 = vector.broadcast %27 : vector<1x84xf32> to vector<16x84xf32>
    %348 = arith.mulf %346, %347 : vector<16x84xf32>
    %349 = vector.extract_strided_slice %343 {offsets = [0, 1], sizes = [16, 83], strides = [1, 1]} : vector<16x84xf32> to vector<16x83xf32>
    %350 = vector.extract_strided_slice %343 {offsets = [0, 0], sizes = [16, 1], strides = [1, 1]} : vector<16x84xf32> to vector<16x1xf32>
    %351 = tpu.concatenate %349, %350 in 1 : vector<16x83xf32>, vector<16x1xf32> -> vector<16x84xf32>
    %352 = vector.broadcast %31 : vector<1x84xf32> to vector<16x84xf32>
    %353 = arith.mulf %351, %352 : vector<16x84xf32>
    %354 = tpu.concatenate %348, %343, %353 in 0 : vector<16x84xf32>, vector<16x84xf32>, vector<16x84xf32> -> vector<48x84xf32>
    %c416 = arith.constant 416 : index
    %c0_128 = arith.constant 0 : index
    %355 = vector.load %arg1[%c416, %c0_128] : memref<672x112xf32, #tpu.memory_space<vmem>>, vector<8x48xf32>
    %cst_129 = arith.constant dense<0.000000e+00> : vector<8x84xf32>
    %356 = tpu.matmul %355, %354, %cst_129 {dimension_numbers = #tpu.dot_dimension_numbers<[1], [0], [0], [1], [0, 0, 1, 1], [], []>} : vector<8x48xf32>, vector<48x84xf32>, vector<8x84xf32> -> vector<8x84xf32>
    %c424 = arith.constant 424 : index
    %c0_130 = arith.constant 0 : index
    %357 = vector.load %arg1[%c424, %c0_130] : memref<672x112xf32, #tpu.memory_space<vmem>>, vector<8x1xf32>
    %358 = vector.broadcast %357 : vector<8x1xf32> to vector<8x84xf32>
    %359 = arith.addf %356, %358 : vector<8x84xf32>
    %cst_131 = arith.constant dense<0.000000e+00> : vector<8xf32>
    %360 = vector.multi_reduction <add>, %359, %cst_131 [1] : vector<8x84xf32> to vector<8xf32>
    %361 = vector.shape_cast %360 : vector<8xf32> to vector<8x1xf32>
    %362 = arith.mulf %359, %359 : vector<8x84xf32>
    %cst_132 = arith.constant dense<0.000000e+00> : vector<8xf32>
    %363 = vector.multi_reduction <add>, %362, %cst_132 [1] : vector<8x84xf32> to vector<8xf32>
    %364 = vector.shape_cast %363 : vector<8xf32> to vector<8x1xf32>
    %cst_133 = arith.constant 0.0119047621 : f32
    %365 = vector.broadcast %cst_133 : f32 to vector<8x1xf32>
    %366 = arith.mulf %361, %365 : vector<8x1xf32>
    %cst_134 = arith.constant 0.0119047621 : f32
    %367 = vector.broadcast %cst_134 : f32 to vector<8x1xf32>
    %368 = arith.mulf %364, %367 : vector<8x1xf32>
    %369 = arith.mulf %366, %366 : vector<8x1xf32>
    %370 = arith.subf %368, %369 : vector<8x1xf32>
    %c432 = arith.constant 432 : index
    %c0_135 = arith.constant 0 : index
    %371 = vector.load %arg1[%c432, %c0_135] : memref<672x112xf32, #tpu.memory_space<vmem>>, vector<8x1xf32>
    %372 = vector.broadcast %366 : vector<8x1xf32> to vector<8x84xf32>
    %373 = arith.subf %359, %372 : vector<8x84xf32>
    %374 = vector.broadcast %371 : vector<8x1xf32> to vector<8x84xf32>
    %375 = arith.mulf %374, %373 : vector<8x84xf32>
    %cst_136 = arith.constant 9.99999974E-6 : f32
    %376 = vector.broadcast %cst_136 : f32 to vector<8x1xf32>
    %377 = arith.addf %370, %376 : vector<8x1xf32>
    %378 = math.rsqrt %377 : vector<8x1xf32>
    %379 = vector.broadcast %378 : vector<8x1xf32> to vector<8x84xf32>
    %380 = arith.mulf %375, %379 : vector<8x84xf32>
    %c440 = arith.constant 440 : index
    %c0_137 = arith.constant 0 : index
    %381 = vector.load %arg1[%c440, %c0_137] : memref<672x112xf32, #tpu.memory_space<vmem>>, vector<8x1xf32>
    %382 = vector.broadcast %381 : vector<8x1xf32> to vector<8x84xf32>
    %383 = arith.addf %380, %382 : vector<8x84xf32>
    %cst_138 = arith.constant 0.000000e+00 : f32
    %384 = vector.broadcast %cst_138 : f32 to vector<8x84xf32>
    %385 = arith.maximumf %383, %384 : vector<8x84xf32>
    %c624 = arith.constant 624 : index
    %c0_139 = arith.constant 0 : index
    %386 = vector.load %arg1[%c624, %c0_139] : memref<672x112xf32, #tpu.memory_space<vmem>>, vector<42x84xf32>
    %387 = vector.extract_strided_slice %385 {offsets = [0, 0], sizes = [8, 42], strides = [1, 1]} : vector<8x84xf32> to vector<8x42xf32>
    %cst_140 = arith.constant dense<0.000000e+00> : vector<8x84xf32>
    %388 = tpu.matmul %387, %386, %cst_140 {dimension_numbers = #tpu.dot_dimension_numbers<[1], [0], [0], [1], [0, 0, 1, 1], [], []>} : vector<8x42xf32>, vector<42x84xf32>, vector<8x84xf32> -> vector<8x84xf32>
    %389 = vector.extract_strided_slice %385 {offsets = [0, 42], sizes = [8, 42], strides = [1, 1]} : vector<8x84xf32> to vector<8x42xf32>
    %cst_141 = arith.constant dense<0.000000e+00> : vector<8x84xf32>
    %390 = tpu.matmul %389, %386, %cst_141 {dimension_numbers = #tpu.dot_dimension_numbers<[1], [0], [0], [1], [0, 0, 1, 1], [], []>} : vector<8x42xf32>, vector<42x84xf32>, vector<8x84xf32> -> vector<8x84xf32>
    %391 = tpu.concatenate %388, %390 in 1 : vector<8x84xf32>, vector<8x84xf32> -> vector<8x168xf32>
    %392 = vector.extract_strided_slice %391 {offsets = [0, 167], sizes = [8, 1], strides = [1, 1]} : vector<8x168xf32> to vector<8x1xf32>
    %393 = vector.extract_strided_slice %391 {offsets = [0, 0], sizes = [8, 167], strides = [1, 1]} : vector<8x168xf32> to vector<8x167xf32>
    %394 = tpu.concatenate %392, %393 in 1 : vector<8x1xf32>, vector<8x167xf32> -> vector<8x168xf32>
    %395 = vector.broadcast %11 : vector<1x168xf32> to vector<8x168xf32>
    %396 = arith.mulf %394, %395 : vector<8x168xf32>
    %397 = vector.extract_strided_slice %391 {offsets = [0, 1], sizes = [8, 167], strides = [1, 1]} : vector<8x168xf32> to vector<8x167xf32>
    %398 = vector.extract_strided_slice %391 {offsets = [0, 0], sizes = [8, 1], strides = [1, 1]} : vector<8x168xf32> to vector<8x1xf32>
    %399 = tpu.concatenate %397, %398 in 1 : vector<8x167xf32>, vector<8x1xf32> -> vector<8x168xf32>
    %400 = vector.broadcast %15 : vector<1x168xf32> to vector<8x168xf32>
    %401 = arith.mulf %399, %400 : vector<8x168xf32>
    %402 = tpu.concatenate %396, %391, %401 in 0 : vector<8x168xf32>, vector<8x168xf32>, vector<8x168xf32> -> vector<24x168xf32>
    %c448 = arith.constant 448 : index
    %c0_142 = arith.constant 0 : index
    %403 = vector.load %arg1[%c448, %c0_142] : memref<672x112xf32, #tpu.memory_space<vmem>>, vector<1x24xf32>
    %cst_143 = arith.constant dense<0.000000e+00> : vector<1x168xf32>
    %404 = tpu.matmul %403, %402, %cst_143 {dimension_numbers = #tpu.dot_dimension_numbers<[1], [0], [0], [1], [0, 0, 1, 1], [], []>} : vector<1x24xf32>, vector<24x168xf32>, vector<1x168xf32> -> vector<1x168xf32>
    %c456 = arith.constant 456 : index
    %c0_144 = arith.constant 0 : index
    %405 = vector.load %arg1[%c456, %c0_144] : memref<672x112xf32, #tpu.memory_space<vmem>>, vector<1x1xf32>
    %406 = vector.broadcast %405 : vector<1x1xf32> to vector<1x168xf32>
    %407 = arith.addf %404, %406 : vector<1x168xf32>
    %c0_145 = arith.constant 0 : index
    %c0_146 = arith.constant 0 : index
    %408 = vector.load %arg4[%c0_145, %c0_146] : memref<1x168xf32, #tpu.memory_space<vmem>>, vector<1x168xf32>
    tpu.vector_store %arg4[%c0_145, %c0_146], %407 {strides = array<i32>} : memref<1x168xf32, #tpu.memory_space<vmem>>, vector<1x168xf32>,
    %c0_147 = arith.constant 0 : index
    %c0_148 = arith.constant 0 : index
    %409 = vector.load %arg5[%c0_147, %c0_148] : memref<32x2xf32, #tpu.memory_space<vmem>>, vector<32x2xf32>
    tpu.vector_store %arg5[%c0_147, %c0_148], %237 {strides = array<i32>} : memref<32x2xf32, #tpu.memory_space<vmem>>, vector<32x2xf32>,
    return
  }
}

</mosaic_0001>

<llo_original>
// kernel: _forward_impl.1
$region0: #{_forward_impl.1}
  #allocation0 [shape = 'u32[]', space=smem, size = 0x4, offset = 0x4, fixed_abs, tag = 'smem constant byte address 0x4 - core index']
  #allocation1 [shape = 'u32[72,128]{1,0:T(1,128)}', space=vmem, size = 0x9000, scoped, tag = 'internal scratch']
  %s0 = inlined_call_operand.vmem [shape: f32[1,168], index: 0, kind: input, shape index: {}]
  %s1 = inlined_call_operand.vmem [shape: f32[672,112], index: 1, kind: input, shape index: {}]
  %s2 = inlined_call_operand.vmem [shape: f32[7,42,2], index: 2, kind: input, shape index: {}]
  %s3 = inlined_call_operand.vmem [shape: f32[7,2,42], index: 3, kind: input, shape index: {}]
  %s4 = inlined_call_operand.vmem [shape: f32[1,168], index: 4, kind: output, shape index: {0}]
  %s5 = inlined_call_operand.vmem [shape: f32[32,2], index: 5, kind: output, shape index: {1}]
  %6 = xla_tuple %s4, %s5
  %s7 = sld [smem:[#allocation0]]
  $region34: #{_forward_impl.1} parent=0
    _
  %s9 = ssub.s32 1, %s7
  %s10 = scalar_select 0, %s9, %s7
  // Predicated region
  $region2: #{_forward_impl.1} parent=0 // pred_check
    _
  $region3: #{_forward_impl.1} parent=0 // pred_check_branch
    %12 = sbr.rel (0) target = $region5
  $region4: #{_forward_impl.1} parent=0 // pred_region
    _
  $region5: #{_forward_impl.1} parent=0 // pred_fallthru
    _
  // Predicated region
  $region6: #{_forward_impl.1} parent=0 // pred_check
    _
  $region7: #{_forward_impl.1} parent=0 // pred_check_branch
    %14 = sbr.rel (0) target = $region9
  $region8: #{_forward_impl.1} parent=0 // pred_region
    _
  $region9: #{_forward_impl.1} parent=0 // pred_fallthru
    _
  // Predicated region
  $region10: #{_forward_impl.1} parent=0 // pred_check
    _
  $region11: #{_forward_impl.1} parent=0 // pred_check_branch
    %16 = sbr.rel (0) target = $region13
  $region12: #{_forward_impl.1} parent=0 // pred_region
    _
  $region13: #{_forward_impl.1} parent=0 // pred_fallthru
    _
  // Predicated region
  $region14: #{_forward_impl.1} parent=0 // pred_check
    _
  $region15: #{_forward_impl.1} parent=0 // pred_check_branch
    %18 = sbr.rel (0) target = $region17
  $region16: #{_forward_impl.1} parent=0 // pred_region
    _
  $region17: #{_forward_impl.1} parent=0 // pred_fallthru
    _
  %v19 = vlaneseq
  %v20 = vand.u32 %v19, 127
  %v21 = vadd.s32 %v20, 128
  %v22 = vcvt.s32.f32 %v20
  %v23 = vcvt.s32.f32 %v21
  %v24 = vrcp.pop 84.0
  %v25 = vmul.f32 84.0, %v24
  %v26 = vsub.f32 1.0, %v25
  %v27 = vmul.f32 %v24, %v26
  %v28 = vadd.f32 %v24, %v27
  %vm29 = vweird.f32 %v24
  %v30 = vsel %vm29, %v24, %v28
  %v31 = vmul.f32 %v22, %v30
  %v32 = vmul.f32 %v23, %v30
  %v33 = vfloor.f32 %v31
  %v34 = vfloor.f32 %v32
  %v35 = vmul.f32 %v33, 84.0
  %v36 = vmul.f32 %v34, 84.0
  %v37 = vsub.f32 %v22, %v35
  %v38 = vsub.f32 %v23, %v36
  %vm39 = vcmp.gt.f32.partialorder %v37, 0.5
  %vm40 = vcmp.gt.f32.partialorder %v38, 0.5
  %v41 = vsel %vm39, 1, 0
  %v42 = vsel %vm40, 1, 0
  %v43 = vcvt.s32.f32 %v41
  %v44 = vcvt.s32.f32 %v42
  %vm45 = vcmp.lt.f32.partialorder %v37, 82.5
  %vm46 = vcmp.lt.f32.partialorder %v38, 82.5
  %v47 = vsel %vm45, 1, 0
  %v48 = vsel %vm46, 1, 0
  %v49 = vcvt.s32.f32 %v47
  %v50 = vcvt.s32.f32 %v48
  %v51 = vrcp.pop 42.0
  %v52 = vmul.f32 42.0, %v51
  %v53 = vsub.f32 1.0, %v52
  %v54 = vmul.f32 %v51, %v53
  %v55 = vadd.f32 %v51, %v54
  %vm56 = vweird.f32 %v51
  %v57 = vsel %vm56, %v51, %v55
  %v58 = vmul.f32 %v22, %v57
  %v59 = vfloor.f32 %v58
  %v60 = vmul.f32 %v59, 42.0
  %v61 = vsub.f32 %v22, %v60
  %vm62 = vcmp.gt.f32.partialorder %v61, 0.5
  %v63 = vsel %vm62, 1, 0
  %v64 = vcvt.s32.f32 %v63
  %vm65 = vcmp.lt.f32.partialorder %v61, 40.5
  %v66 = vsel %vm65, 1, 0
  %v67 = vcvt.s32.f32 %v66
  %v68 = vrcp.pop 21.0
  %v69 = vmul.f32 21.0, %v68
  %v70 = vsub.f32 1.0, %v69
  %v71 = vmul.f32 %v68, %v70
  %v72 = vadd.f32 %v68, %v71
  %vm73 = vweird.f32 %v68
  %v74 = vsel %vm73, %v68, %v72
  %v75 = vmul.f32 %v22, %v74
  %v76 = vfloor.f32 %v75
  %v77 = vmul.f32 %v76, 21.0
  %v78 = vsub.f32 %v22, %v77
  %vm79 = vcmp.gt.f32.partialorder %v78, 0.5
  %v80 = vsel %vm79, 1, 0
  %v81 = vcvt.s32.f32 %v80
  %vm82 = vcmp.lt.f32.partialorder %v78, 19.5
  %v83 = vsel %vm82, 1, 0
  %v84 = vcvt.s32.f32 %v83
  %v85 = vld [vmem:[%s0] sm:$0x3]
  %v87 = vperm.slane %v85, 1
  %88 = vrot.lane.b32.xlu0 %v87, 89
  %v89 = vpop.permute.xlu0 %88
  %v91 = vperm.slane %v85, 0
  %92 = vrot.lane.b32.xlu0 %v91, 1
  %v93 = vpop.permute.xlu0 %92
  %94 = vrot.lane.b32.xlu0 %v87, 1
  %v95 = vpop.permute.xlu0 %94
  %vm96 = vcmask 7168
  %v97 = vsel %vm96, %v93, %v95
  %v100 = vsel %vm96, %v89, %v93
  %v101 = vmul.f32 %v100, %v43
  %v102 = vmul.f32 %v97, %v44
  %103 = vrot.lane.b32.xlu0 %v91, 127
  %v104 = vpop.permute.xlu0 %103
  %105 = vrot.lane.b32.xlu0 %v87, 127
  %v106 = vpop.permute.xlu0 %105
  %vm107 = vcmask 1039360
  %v108 = vsel %vm107, %v104, %v106
  %111 = vrot.lane.b32.xlu0 %v91, 39
  %v112 = vpop.permute.xlu0 %111
  %vm114 = vcmask 318464
  %v115 = vsel %vm114, %v106, %v112
  %v116 = vmul.f32 %v108, %v49
  %v117 = vmul.f32 %v115, %v50
  %v122 = vrot.slane %v116, 6
  %v123 = vrot.slane %v117, 6
  %vm126 = vcmask 1040384
  %v127 = vsel %vm126, %v101, %v91
  %v128 = vsel %vm126, %v102, %v87
  %vm129 = vcmask 1041408
  %v130 = vsel %vm129, %v127, %v122
  %v131 = vsel %vm129, %v128, %v123
  %v132 = vld [vmem:[%s1] sm:$0xff]
  %v133 = vld [vmem:[%s1 + $0x8] sm:$0xff]
  %135 = vset.pattern.permute.xlu0 0
  %136 = vperm.xlu0 %135, %v133
  %v137 = vpop.permute.xlu0 %136
  %vm139 = vcmask 23552
  %v141 = vsel %vm139, %v132, 0
  %vm143 = vcmask 1042432
  %v145 = vsel %vm143, %v130, 0
  %v148 = vsel %vm143, %v131, 0
  %150 = vmatpush.msra.mxu0 0.0
  %151 = vmatpush.msra.mxu0 0.0
  %152 = vmatpush.msra.mxu0 0.0
  %153 = vmatpush.msra.mxu0 0.0
  %154 = vmatpush.msra.mxu0 0.0
  %155 = vmatpush.msra.mxu0 0.0
  %156 = vmatpush.msra.mxu0 0.0
  %157 = vmatpush.msra.mxu0 0.0
  %158 = vmatpush.msra.mxu0 0.0
  %159 = vmatpush.msra.mxu0 0.0
  %160 = vmatpush.msra.mxu0 0.0
  %161 = vmatpush.msra.mxu0 0.0
  %162 = vmatpush.msra.mxu0 0.0
  %163 = vmatpush.msra.mxu0 0.0
  %164 = vmatpush.msra.mxu0 0.0
  %165 = vmatpush.msra.mxu0 %v145
  %166 = vmatmul.f32.gmra.mxu0 %v141
  %v167 = vpop.f32.mrf.mxu0
  %v168 = vadd.f32 %v137, %v167
  %169 = vdwg.mxu0
  %170 = vmatpush.msra.mxu0 0.0
  %171 = vmatpush.msra.mxu0 0.0
  %172 = vmatpush.msra.mxu0 0.0
  %173 = vmatpush.msra.mxu0 0.0
  %174 = vmatpush.msra.mxu0 0.0
  %175 = vmatpush.msra.mxu0 0.0
  %176 = vmatpush.msra.mxu0 0.0
  %177 = vmatpush.msra.mxu0 0.0
  %178 = vmatpush.msra.mxu0 0.0
  %179 = vmatpush.msra.mxu0 0.0
  %180 = vmatpush.msra.mxu0 0.0
  %181 = vmatpush.msra.mxu0 0.0
  %182 = vmatpush.msra.mxu0 0.0
  %183 = vmatpush.msra.mxu0 0.0
  %184 = vmatpush.msra.mxu0 0.0
  %185 = vmatpush.msra.mxu0 %v148
  %186 = vmatmul.f32.gmra.mxu0 %v141
  %v187 = vpop.f32.mrf.mxu0
  %v188 = vadd.f32 %v137, %v187
  %189 = vdwg.mxu0
  %vm190 = vcmask 326656
  %v191 = vsel %vm190, %v188, 0.0
  %v192 = vadd.f32 %v168, %v191
  %193 = vadd.xlane.f32.xlu0 %v192
  %v194 = vpop.xlane.xlu0 %193
  %v195 = vmul.f32 %v168, %v168
  %v196 = vmul.f32 %v188, %v188
  %v197 = vsel %vm190, %v196, 0.0
  %v198 = vadd.f32 %v195, %v197
  %199 = vadd.xlane.f32.xlu0 %v198
  %v200 = vpop.xlane.xlu0 %199
  %v201 = vmul.f32 %v194, 0.005952381
  %v202 = vmul.f32 %v200, 0.005952381
  %v203 = vmul.f32 %v201, %v201
  %v204 = vsub.f32 %v202, %v203
  %v205 = vld [vmem:[%s1 + $0x10] sm:$0xff]
  %v206 = vsub.f32 %v168, %v201
  %v207 = vsub.f32 %v188, %v201
  %209 = vset.pattern.permute.xlu0 0
  %210 = vperm.xlu0 %209, %v205
  %v211 = vpop.permute.xlu0 %210
  %v213 = vmul.f32 %v211, %v206
  %v214 = vmul.f32 %v211, %v207
  %v215 = vadd.f32 %v204, 1e-05
  %v216 = vrsqrt.pop %v215
  %v217 = vmul.f32 %v216, %v215
  %v218 = vmul.f32 %v217, %v216
  %v219 = vmul.f32 0.5, %v218
  %v220 = vsub.f32 1.5, %v219
  %v221 = vmul.f32 %v216, %v220
  %vm222 = vweird.f32 %v215
  %vm223 = vweird.f32 %v216
  %vm224 = vmor %vm222, %vm223
  %v225 = vsel %vm224, %v216, %v221
  %v226 = vmul.f32 %v213, %v225
  %v227 = vmul.f32 %v214, %v225
  %v228 = vld [vmem:[%s1 + $0x18] sm:$0xff]
  %230 = vset.pattern.permute.xlu0 0
  %231 = vperm.xlu0 %230, %v228
  %v232 = vpop.permute.xlu0 %231
  %v234 = vadd.f32 %v226, %v232
  %v235 = vadd.f32 %v227, %v232
  %v236 = vmax.f32 %v234, 0.0
  %v237 = vmax.f32 %v235, 0.0
  %240 = vrot.lane.b32.xlu0 %v236, 127
  %v241 = vpop.permute.xlu0 %240
  %242 = vrot.lane.b32.xlu0 %v237, 127
  %v243 = vpop.permute.xlu0 %242
  %v244 = vsel %vm107, %v241, %v243
  %247 = vrot.lane.b32.xlu0 %v236, 39
  %v248 = vpop.permute.xlu0 %247
  %v250 = vsel %vm114, %v243, %v248
  %v251 = vmax.f32 %v236, %v244
  %v252 = vmax.f32 %v237, %v250
  %v253 = vld [vmem:[%s1 + $0x1d0] sm:$0xff]
  %v254 = vld [vmem:[%s1 + $0x1d8] sm:$0xff]
  %v255 = vld [vmem:[%s1 + $0x1e0] sm:$0xff]
  %v256 = vld [vmem:[%s1 + $0x1e8] sm:$0xff]
  %v257 = vld [vmem:[%s1 + $0x1f0] sm:$0xff]
  %v258 = vld [vmem:[%s1 + $0x1f8] sm:$0xff]
  %v259 = vld [vmem:[%s1 + $0x200] sm:$0xff]
  %v260 = vld [vmem:[%s1 + $0x208] sm:$0xff]
  %v261 = vld [vmem:[%s1 + $0x210] sm:$0xff]
  %v262 = vld [vmem:[%s1 + $0x218] sm:$0xff]
  %v263 = vld [vmem:[%s1 + $0x220] sm:$0xf]
  %vm264 = vcmask 687104
  %v266 = vsel %vm264, %v251, 0
  %vm268 = vcmask 1043456
  %v270 = vsel %vm268, %v263, 0
  %272 = vmatpush.msra.mxu0 0.0
  %273 = vmatpush.msra.mxu0 0.0
  %274 = vmatpush.msra.mxu0 0.0
  %275 = vmatpush.msra.mxu0 0.0
  %276 = vmatpush.msra.mxu0 0.0
  %277 = vmatpush.msra.mxu0 %v270
  %278 = vmatpush.msra.mxu0 %v262
  %279 = vmatpush.msra.mxu0 %v261
  %280 = vmatpush.msra.mxu0 %v260
  %281 = vmatpush.msra.mxu0 %v259
  %282 = vmatpush.msra.mxu0 %v258
  %283 = vmatpush.msra.mxu0 %v257
  %284 = vmatpush.msra.mxu0 %v256
  %285 = vmatpush.msra.mxu0 %v255
  %286 = vmatpush.msra.mxu0 %v254
  %287 = vmatpush.msra.mxu0 %v253
  %288 = vmatmul.f32.gmra.mxu0 %v266
  %v289 = vpop.f32.mrf.mxu0
  %v290 = vadd.f32 0.0, %v289
  %291 = vdwg.mxu0
  %293 = vrot.lane.b32.xlu0 %v251, 44
  %v294 = vpop.permute.xlu0 %293
  %295 = vrot.lane.b32.xlu0 %v252, 44
  %v296 = vpop.permute.xlu0 %295
  %vm297 = vcmask 359424
  %v298 = vsel %vm297, %v294, %v296
  %v299 = vsel %vm264, %v298, 0
  %301 = vmatpush.msra.mxu0 0.0
  %302 = vmatpush.msra.mxu0 0.0
  %303 = vmatpush.msra.mxu0 0.0
  %304 = vmatpush.msra.mxu0 0.0
  %305 = vmatpush.msra.mxu0 0.0
  %306 = vmatpush.msra.mxu0 %v270
  %307 = vmatpush.msra.mxu0 %v262
  %308 = vmatpush.msra.mxu0 %v261
  %309 = vmatpush.msra.mxu0 %v260
  %310 = vmatpush.msra.mxu0 %v259
  %311 = vmatpush.msra.mxu0 %v258
  %312 = vmatpush.msra.mxu0 %v257
  %313 = vmatpush.msra.mxu0 %v256
  %314 = vmatpush.msra.mxu0 %v255
  %315 = vmatpush.msra.mxu0 %v254
  %316 = vmatpush.msra.mxu0 %v253
  %317 = vmatmul.f32.gmra.mxu0 %v299
  %v318 = vpop.f32.mrf.mxu0
  %v319 = vadd.f32 0.0, %v318
  %320 = vdwg.mxu0
  %322 = vrot.lane.b32.xlu0 %v319, 42
  %v323 = vpop.permute.xlu0 %322
  %vm325 = vcmask 343040
  %v326 = vsel %vm325, %v290, %v323
  %328 = vrot.lane.b32.xlu0 %v326, 45
  %v329 = vpop.permute.xlu0 %328
  %331 = vrot.lane.b32.xlu0 %v326, 1
  %v332 = vpop.permute.xlu0 %331
  %v334 = vsel %vm96, %v329, %v332
  %v335 = vmul.f32 %v334, %v64
  %336 = vrot.lane.b32.xlu0 %v326, 127
  %v337 = vpop.permute.xlu0 %336
  %339 = vrot.lane.b32.xlu0 %v326, 83
  %v340 = vpop.permute.xlu0 %339
  %vm342 = vcmask 678912
  %v343 = vsel %vm342, %v337, %v340
  %v344 = vmul.f32 %v343, %v67
  %v345 = vld [vmem:[%s1 + $0x20] sm:$0xff]
  %v346 = vld [vmem:[%s1 + $0x28] sm:$0xff]
  %v347 = vld [vmem:[%s1 + $0x30] sm:$0xff]
  %v348 = vld [vmem:[%s1 + $0x38] sm:$0xff]
  %350 = vset.pattern.permute.xlu0 0
  %351 = vperm.xlu0 %350, %v347
  %v352 = vpop.permute.xlu0 %351
  %355 = vset.pattern.permute.xlu0 0
  %356 = vperm.xlu0 %355, %v348
  %v357 = vpop.permute.xlu0 %356
  %vm359 = vcmask 195584
  %v361 = vsel %vm359, %v345, 0
  %v364 = vsel %vm359, %v346, 0
  %366 = vmatpush.msra.mxu0 0.0
  %367 = vmatpush.msra.mxu0 0.0
  %368 = vmatpush.msra.mxu0 0.0
  %369 = vmatpush.msra.mxu0 0.0
  %370 = vmatpush.msra.mxu0 0.0
  %371 = vmatpush.msra.mxu0 0.0
  %372 = vmatpush.msra.mxu0 0.0
  %373 = vmatpush.msra.mxu0 0.0
  %374 = vmatpush.msra.mxu0 0.0
  %375 = vmatpush.msra.mxu0 0.0
  %376 = vmatpush.msra.mxu0 0.0
  %377 = vmatpush.msra.mxu0 0.0
  %378 = vmatpush.msra.mxu0 0.0
  %379 = vmatpush.msra.mxu0 %v344
  %380 = vmatpush.msra.mxu0 %v326
  %381 = vmatpush.msra.mxu0 %v335
  %382 = vmatmul.f32.gmra.mxu0 %v361
  %v383 = vpop.f32.mrf.mxu0
  %v384 = vadd.f32 %v352, %v383
  %385 = vmatmul.f32.gmra.mxu0 %v364
  %v386 = vpop.f32.mrf.mxu0
  %v387 = vadd.f32 %v357, %v386
  %388 = vdwg.mxu0
  %v389 = vsel %vm264, %v384, 0.0
  %390 = vadd.xlane.f32.xlu0 %v389
  %v391 = vpop.xlane.xlu0 %390
  %v392 = vsel %vm264, %v387, 0.0
  %393 = vadd.xlane.f32.xlu0 %v392
  %v394 = vpop.xlane.xlu0 %393
  %v395 = vmul.f32 %v384, %v384
  %v396 = vmul.f32 %v387, %v387
  %v397 = vsel %vm264, %v395, 0.0
  %398 = vadd.xlane.f32.xlu0 %v397
  %v399 = vpop.xlane.xlu0 %398
  %v400 = vsel %vm264, %v396, 0.0
  %401 = vadd.xlane.f32.xlu0 %v400
  %v402 = vpop.xlane.xlu0 %401
  %v403 = vmul.f32 %v391, 0.011904762
  %v404 = vmul.f32 %v394, 0.011904762
  %v405 = vmul.f32 %v399, 0.011904762
  %v406 = vmul.f32 %v402, 0.011904762
  %v407 = vmul.f32 %v403, %v403
  %v408 = vmul.f32 %v404, %v404
  %v409 = vsub.f32 %v405, %v407
  %v410 = vsub.f32 %v406, %v408
  %v411 = vld [vmem:[%s1 + $0x40] sm:$0xff]
  %v412 = vld [vmem:[%s1 + $0x48] sm:$0xff]
  %v413 = vsub.f32 %v384, %v403
  %v414 = vsub.f32 %v387, %v404
  %416 = vset.pattern.permute.xlu0 0
  %417 = vperm.xlu0 %416, %v411
  %v418 = vpop.permute.xlu0 %417
  %421 = vset.pattern.permute.xlu0 0
  %422 = vperm.xlu0 %421, %v412
  %v423 = vpop.permute.xlu0 %422
  %v425 = vmul.f32 %v418, %v413
  %v426 = vmul.f32 %v423, %v414
  %v427 = vadd.f32 %v409, 1e-05
  %v428 = vadd.f32 %v410, 1e-05
  %v429 = vrsqrt.pop %v427
  %v430 = vmul.f32 %v429, %v427
  %v431 = vmul.f32 %v430, %v429
  %v432 = vmul.f32 0.5, %v431
  %v433 = vsub.f32 1.5, %v432
  %v434 = vmul.f32 %v429, %v433
  %vm435 = vweird.f32 %v427
  %vm436 = vweird.f32 %v429
  %vm437 = vmor %vm435, %vm436
  %v438 = vsel %vm437, %v429, %v434
  %v439 = vrsqrt.pop %v428
  %v440 = vmul.f32 %v439, %v428
  %v441 = vmul.f32 %v440, %v439
  %v442 = vmul.f32 0.5, %v441
  %v443 = vsub.f32 1.5, %v442
  %v444 = vmul.f32 %v439, %v443
  %vm445 = vweird.f32 %v428
  %vm446 = vweird.f32 %v439
  %vm447 = vmor %vm445, %vm446
  %v448 = vsel %vm447, %v439, %v444
  %v449 = vmul.f32 %v425, %v438
  %v450 = vmul.f32 %v426, %v448
  %v451 = vld [vmem:[%s1 + $0x50] sm:$0xff]
  %v452 = vld [vmem:[%s1 + $0x58] sm:$0xff]
  %454 = vset.pattern.permute.xlu0 0
  %455 = vperm.xlu0 %454, %v451
  %v456 = vpop.permute.xlu0 %455
  %459 = vset.pattern.permute.xlu0 0
  %460 = vperm.xlu0 %459, %v452
  %v461 = vpop.permute.xlu0 %460
  %v463 = vadd.f32 %v449, %v456
  %v464 = vadd.f32 %v450, %v461
  %v465 = vmax.f32 %v463, 0.0
  %v466 = vmax.f32 %v464, 0.0
  %469 = vrot.lane.b32.xlu0 %v465, 127
  %v470 = vpop.permute.xlu0 %469
  %471 = vrot.lane.b32.xlu0 %v466, 127
  %v472 = vpop.permute.xlu0 %471
  %475 = vrot.lane.b32.xlu0 %v465, 83
  %v476 = vpop.permute.xlu0 %475
  %477 = vrot.lane.b32.xlu0 %v466, 83
  %v478 = vpop.permute.xlu0 %477
  %v481 = vsel %vm342, %v470, %v476
  %v482 = vsel %vm342, %v472, %v478
  %v483 = vmax.f32 %v465, %v481
  %v484 = vmax.f32 %v466, %v482
  %v485 = vld [vmem:[%s1 + $0x228] sm:$0xff]
  %v486 = vld [vmem:[%s1 + $0x230] sm:$0xff]
  %v487 = vld [vmem:[%s1 + $0x238] sm:$0xff]
  %v488 = vld [vmem:[%s1 + $0x240] sm:$0xff]
  %v489 = vld [vmem:[%s1 + $0x248] sm:$0xff]
  %v490 = vld [vmem:[%s1 + $0x250] sm:$0x3]
  %v492 = vsel %vm325, %v483, 0
  %v495 = vsel %vm325, %v484, 0
  %v498 = vsel %vm129, %v490, 0
  %500 = vmatpush.msra.mxu0 0.0
  %501 = vmatpush.msra.mxu0 0.0
  %502 = vmatpush.msra.mxu0 0.0
  %503 = vmatpush.msra.mxu0 0.0
  %504 = vmatpush.msra.mxu0 0.0
  %505 = vmatpush.msra.mxu0 0.0
  %506 = vmatpush.msra.mxu0 0.0
  %507 = vmatpush.msra.mxu0 0.0
  %508 = vmatpush.msra.mxu0 0.0
  %509 = vmatpush.msra.mxu0 0.0
  %510 = vmatpush.msra.mxu0 %v498
  %511 = vmatpush.msra.mxu0 %v489
  %512 = vmatpush.msra.mxu0 %v488
  %513 = vmatpush.msra.mxu0 %v487
  %514 = vmatpush.msra.mxu0 %v486
  %515 = vmatpush.msra.mxu0 %v485
  %516 = vmatmul.f32.gmra.mxu0 %v492
  %v517 = vpop.f32.mrf.mxu0
  %v518 = vadd.f32 0.0, %v517
  %519 = vmatmul.f32.gmra.mxu0 %v495
  %v520 = vpop.f32.mrf.mxu0
  %v521 = vadd.f32 0.0, %v520
  %522 = vdwg.mxu0
  %523 = vrot.lane.b32.xlu0 %v483, 86
  %v524 = vpop.permute.xlu0 %523
  %525 = vrot.lane.b32.xlu0 %v484, 86
  %v526 = vpop.permute.xlu0 %525
  %v527 = vsel %vm325, %v524, 0
  %v529 = vsel %vm325, %v526, 0
  %531 = vmatpush.msra.mxu0 0.0
  %532 = vmatpush.msra.mxu0 0.0
  %533 = vmatpush.msra.mxu0 0.0
  %534 = vmatpush.msra.mxu0 0.0
  %535 = vmatpush.msra.mxu0 0.0
  %536 = vmatpush.msra.mxu0 0.0
  %537 = vmatpush.msra.mxu0 0.0
  %538 = vmatpush.msra.mxu0 0.0
  %539 = vmatpush.msra.mxu0 0.0
  %540 = vmatpush.msra.mxu0 0.0
  %541 = vmatpush.msra.mxu0 %v498
  %542 = vmatpush.msra.mxu0 %v489
  %543 = vmatpush.msra.mxu0 %v488
  %544 = vmatpush.msra.mxu0 %v487
  %545 = vmatpush.msra.mxu0 %v486
  %546 = vmatpush.msra.mxu0 %v485
  %547 = vmatmul.f32.gmra.mxu0 %v527
  %v548 = vpop.f32.mrf.mxu0
  %v549 = vadd.f32 0.0, %v548
  %550 = vmatmul.f32.gmra.mxu0 %v529
  %v551 = vpop.f32.mrf.mxu0
  %v552 = vadd.f32 0.0, %v551
  %553 = vdwg.mxu0
  %556 = vrot.lane.b32.xlu0 %v549, 21
  %v557 = vpop.permute.xlu0 %556
  %558 = vrot.lane.b32.xlu0 %v552, 21
  %v559 = vpop.permute.xlu0 %558
  %vm562 = vcmask 171008
  %v563 = vsel %vm562, %v518, %v557
  %v564 = vsel %vm562, %v521, %v559
  %567 = vrot.lane.b32.xlu0 %v563, 87
  %v568 = vpop.permute.xlu0 %567
  %569 = vrot.lane.b32.xlu0 %v564, 87
  %v570 = vpop.permute.xlu0 %569
  %573 = vrot.lane.b32.xlu0 %v563, 1
  %v574 = vpop.permute.xlu0 %573
  %575 = vrot.lane.b32.xlu0 %v564, 1
  %v576 = vpop.permute.xlu0 %575
  %v579 = vsel %vm96, %v568, %v574
  %v580 = vsel %vm96, %v570, %v576
  %v581 = vmul.f32 %v579, %v81
  %v582 = vmul.f32 %v580, %v81
  %583 = vrot.lane.b32.xlu0 %v563, 127
  %v584 = vpop.permute.xlu0 %583
  %585 = vrot.lane.b32.xlu0 %v564, 127
  %v586 = vpop.permute.xlu0 %585
  %589 = vrot.lane.b32.xlu0 %v563, 41
  %v590 = vpop.permute.xlu0 %589
  %591 = vrot.lane.b32.xlu0 %v564, 41
  %v592 = vpop.permute.xlu0 %591
  %vm595 = vcmask 334848
  %v596 = vsel %vm595, %v584, %v590
  %v597 = vsel %vm595, %v586, %v592
  %v598 = vmul.f32 %v596, %v84
  %v599 = vmul.f32 %v597, %v84
  %v600 = vld [vmem:[%s1 + $0x60] sm:$0xff]
  %v601 = vld [vmem:[%s1 + $0x68] sm:$0xff]
  %v602 = vld [vmem:[%s1 + $0x70] sm:$0xff]
  %v603 = vld [vmem:[%s1 + $0x78] sm:$0xff]
  %605 = vset.pattern.permute.xlu0 0
  %606 = vperm.xlu0 %605, %v602
  %v607 = vpop.permute.xlu0 %606
  %610 = vset.pattern.permute.xlu0 0
  %611 = vperm.xlu0 %610, %v603
  %v612 = vpop.permute.xlu0 %611
  %vm614 = vcmask 392192
  %v616 = vsel %vm614, %v600, 0
  %v619 = vsel %vm614, %v601, 0
  %621 = vmatpush.msra.mxu0 0.0
  %622 = vmatpush.msra.mxu0 0.0
  %623 = vmatpush.msra.mxu0 0.0
  %624 = vmatpush.msra.mxu0 0.0
  %625 = vmatpush.msra.mxu0 0.0
  %626 = vmatpush.msra.mxu0 0.0
  %627 = vmatpush.msra.mxu0 0.0
  %628 = vmatpush.msra.mxu0 0.0
  %629 = vmatpush.msra.mxu0 0.0
  %630 = vmatpush.msra.mxu0 0.0
  %631 = vmatpush.msra.mxu0 %v599
  %632 = vmatpush.msra.mxu0 %v598
  %633 = vmatpush.msra.mxu0 %v564
  %634 = vmatpush.msra.mxu0 %v563
  %635 = vmatpush.msra.mxu0 %v582
  %636 = vmatpush.msra.mxu0 %v581
  %637 = vmatmul.f32.gmra.mxu0 %v616
  %v638 = vpop.f32.mrf.mxu0
  %v639 = vadd.f32 %v607, %v638
  %640 = vmatmul.f32.gmra.mxu0 %v619
  %v641 = vpop.f32.mrf.mxu0
  %v642 = vadd.f32 %v612, %v641
  %643 = vdwg.mxu0
  %v644 = vsel %vm325, %v639, 0.0
  %645 = vadd.xlane.f32.xlu0 %v644
  %v646 = vpop.xlane.xlu0 %645
  %v647 = vsel %vm325, %v642, 0.0
  %648 = vadd.xlane.f32.xlu0 %v647
  %v649 = vpop.xlane.xlu0 %648
  %v650 = vmul.f32 %v639, %v639
  %v651 = vmul.f32 %v642, %v642
  %v652 = vsel %vm325, %v650, 0.0
  %653 = vadd.xlane.f32.xlu0 %v652
  %v654 = vpop.xlane.xlu0 %653
  %v655 = vsel %vm325, %v651, 0.0
  %656 = vadd.xlane.f32.xlu0 %v655
  %v657 = vpop.xlane.xlu0 %656
  %v658 = vmul.f32 %v646, 0.023809524
  %v659 = vmul.f32 %v649, 0.023809524
  %v660 = vmul.f32 %v654, 0.023809524
  %v661 = vmul.f32 %v657, 0.023809524
  %v662 = vmul.f32 %v658, %v658
  %v663 = vmul.f32 %v659, %v659
  %v664 = vsub.f32 %v660, %v662
  %v665 = vsub.f32 %v661, %v663
  %v666 = vld [vmem:[%s1 + $0x80] sm:$0xff]
  %v667 = vld [vmem:[%s1 + $0x88] sm:$0xff]
  %v668 = vsub.f32 %v639, %v658
  %v669 = vsub.f32 %v642, %v659
  %671 = vset.pattern.permute.xlu0 0
  %672 = vperm.xlu0 %671, %v666
  %v673 = vpop.permute.xlu0 %672
  %676 = vset.pattern.permute.xlu0 0
  %677 = vperm.xlu0 %676, %v667
  %v678 = vpop.permute.xlu0 %677
  %v680 = vmul.f32 %v673, %v668
  %v681 = vmul.f32 %v678, %v669
  %v682 = vadd.f32 %v664, 1e-05
  %v683 = vadd.f32 %v665, 1e-05
  %v684 = vrsqrt.pop %v682
  %v685 = vmul.f32 %v684, %v682
  %v686 = vmul.f32 %v685, %v684
  %v687 = vmul.f32 0.5, %v686
  %v688 = vsub.f32 1.5, %v687
  %v689 = vmul.f32 %v684, %v688
  %vm690 = vweird.f32 %v682
  %vm691 = vweird.f32 %v684
  %vm692 = vmor %vm690, %vm691
  %v693 = vsel %vm692, %v684, %v689
  %v694 = vrsqrt.pop %v683
  %v695 = vmul.f32 %v694, %v683
  %v696 = vmul.f32 %v695, %v694
  %v697 = vmul.f32 0.5, %v696
  %v698 = vsub.f32 1.5, %v697
  %v699 = vmul.f32 %v694, %v698
  %vm700 = vweird.f32 %v683
  %vm701 = vweird.f32 %v694
  %vm702 = vmor %vm700, %vm701
  %v703 = vsel %vm702, %v694, %v699
  %v704 = vmul.f32 %v680, %v693
  %v705 = vmul.f32 %v681, %v703
  %v706 = vld [vmem:[%s1 + $0x90] sm:$0xff]
  %v707 = vld [vmem:[%s1 + $0x98] sm:$0xff]
  %709 = vset.pattern.permute.xlu0 0
  %710 = vperm.xlu0 %709, %v706
  %v711 = vpop.permute.xlu0 %710
  %714 = vset.pattern.permute.xlu0 0
  %715 = vperm.xlu0 %714, %v707
  %v716 = vpop.permute.xlu0 %715
  %v718 = vadd.f32 %v704, %v711
  %v719 = vadd.f32 %v705, %v716
  %v720 = vmax.f32 %v718, 0.0
  %v721 = vmax.f32 %v719, 0.0
  %v722 = vld [vmem:[%s1 + $0xa0] sm:$0xff]
  %v723 = vld [vmem:[%s1 + $0xa8] sm:$0xff]
  %v724 = vld [vmem:[%s1 + $0xb0] sm:$0xff]
  %v725 = vld [vmem:[%s1 + $0xb8] sm:$0xff]
  %v726 = vld [vmem:[%s2] sm:$0xff]
  %v727 = vld [vmem:[%s2 + $0x8] sm:$0xff]
  %v728 = vld [vmem:[%s2 + $0x10] sm:$0xff]
  %v729 = vld [vmem:[%s2 + $0x18] sm:$0xff]
  %v730 = vld [vmem:[%s2 + $0x20] sm:$0xff]
  %v731 = vld [vmem:[%s2 + $0x28] sm:$0x3]
  %v733 = vsel %vm325, %v720, 0
  %v736 = vsel %vm325, %v721, 0
  %v739 = vsel %vm129, %v731, 0
  %741 = vmatpush.msra.mxu0 0.0
  %742 = vmatpush.msra.mxu0 0.0
  %743 = vmatpush.msra.mxu0 0.0
  %744 = vmatpush.msra.mxu0 0.0
  %745 = vmatpush.msra.mxu0 0.0
  %746 = vmatpush.msra.mxu0 0.0
  %747 = vmatpush.msra.mxu0 0.0
  %748 = vmatpush.msra.mxu0 0.0
  %749 = vmatpush.msra.mxu0 0.0
  %750 = vmatpush.msra.mxu0 0.0
  %751 = vmatpush.msra.mxu0 %v739
  %752 = vmatpush.msra.mxu0 %v730
  %753 = vmatpush.msra.mxu0 %v729
  %754 = vmatpush.msra.mxu0 %v728
  %755 = vmatpush.msra.mxu0 %v727
  %756 = vmatpush.msra.mxu0 %v726
  %757 = vmatmul.f32.gmra.mxu0 %v733
  %v758 = vpop.f32.mrf.mxu0
  %v759 = vadd.f32 0.0, %v758
  %760 = vmatmul.f32.gmra.mxu0 %v736
  %v761 = vpop.f32.mrf.mxu0
  %v762 = vadd.f32 0.0, %v761
  %763 = vdwg.mxu0
  %s764 = scalar_lea.vmem %s2, 48
  %v765 = vld [vmem:[%s764] sm:$0xff]
  %v766 = vld [vmem:[%s764 + $0x8] sm:$0xff]
  %v767 = vld [vmem:[%s764 + $0x10] sm:$0xff]
  %v768 = vld [vmem:[%s764 + $0x18] sm:$0xff]
  %v769 = vld [vmem:[%s764 + $0x20] sm:$0xff]
  %v770 = vld [vmem:[%s764 + $0x28] sm:$0x3]
  %v772 = vsel %vm129, %v770, 0
  %774 = vmatpush.msra.mxu0 0.0
  %775 = vmatpush.msra.mxu0 0.0
  %776 = vmatpush.msra.mxu0 0.0
  %777 = vmatpush.msra.mxu0 0.0
  %778 = vmatpush.msra.mxu0 0.0
  %779 = vmatpush.msra.mxu0 0.0
  %780 = vmatpush.msra.mxu0 0.0
  %781 = vmatpush.msra.mxu0 0.0
  %782 = vmatpush.msra.mxu0 0.0
  %783 = vmatpush.msra.mxu0 0.0
  %784 = vmatpush.msra.mxu0 %v772
  %785 = vmatpush.msra.mxu0 %v769
  %786 = vmatpush.msra.mxu0 %v768
  %787 = vmatpush.msra.mxu0 %v767
  %788 = vmatpush.msra.mxu0 %v766
  %789 = vmatpush.msra.mxu0 %v765
  %790 = vmatmul.f32.gmra.mxu0 %v733
  %v791 = vpop.f32.mrf.mxu0
  %v792 = vadd.f32 0.0, %v791
  %793 = vmatmul.f32.gmra.mxu0 %v736
  %v794 = vpop.f32.mrf.mxu0
  %v795 = vadd.f32 0.0, %v794
  %796 = vdwg.mxu0
  %801 = vrot.lane.b32.xlu0 %v722, 112
  %v802 = vpop.permute.xlu0 %801
  %803 = vrot.lane.b32.xlu0 %v723, 112
  %v804 = vpop.permute.xlu0 %803
  %805 = vrot.lane.b32.xlu0 %v724, 112
  %v806 = vpop.permute.xlu0 %805
  %807 = vrot.lane.b32.xlu0 %v725, 112
  %v808 = vpop.permute.xlu0 %807
  %vm809 = vcmask 130048
  %v810 = vsel %vm809, %v802, 0
  %v812 = vsel %vm809, %v804, 0
  %v814 = vsel %vm809, %v806, 0
  %v816 = vsel %vm809, %v808, 0
  %818 = vmatpush.msra.mxu0 0.0
  %819 = vmatpush.msra.mxu0 0.0
  %820 = vmatpush.msra.mxu0 0.0
  %821 = vmatpush.msra.mxu0 0.0
  %822 = vmatpush.msra.mxu0 0.0
  %823 = vmatpush.msra.mxu0 0.0
  %824 = vmatpush.msra.mxu0 0.0
  %825 = vmatpush.msra.mxu0 0.0
  %826 = vmatpush.msra.mxu0 0.0
  %827 = vmatpush.msra.mxu0 0.0
  %828 = vmatpush.msra.mxu0 0.0
  %829 = vmatpush.msra.mxu0 0.0
  %830 = vmatpush.msra.mxu0 0.0
  %831 = vmatpush.msra.mxu0 0.0
  %832 = vmatpush.msra.mxu0 %v795
  %833 = vmatpush.msra.mxu0 %v792
  %834 = vmatmul.f32.gmra.mxu0 %v810
  %v835 = vpop.f32.mrf.mxu0
  %v836 = vadd.f32 0.0, %v835
  %837 = vmatmul.f32.gmra.mxu0 %v812
  %v838 = vpop.f32.mrf.mxu0
  %v839 = vadd.f32 0.0, %v838
  %840 = vmatmul.f32.gmra.mxu0 %v814
  %v841 = vpop.f32.mrf.mxu0
  %v842 = vadd.f32 0.0, %v841
  %843 = vmatmul.f32.gmra.mxu0 %v816
  %v844 = vpop.f32.mrf.mxu0
  %v845 = vadd.f32 0.0, %v844
  %846 = vdwg.mxu0
  %v847 = vsel %vm809, %v722, 0
  %v849 = vsel %vm809, %v723, 0
  %v851 = vsel %vm809, %v724, 0
  %v853 = vsel %vm809, %v725, 0
  %855 = vmatpush.msra.mxu0 0.0
  %856 = vmatpush.msra.mxu0 0.0
  %857 = vmatpush.msra.mxu0 0.0
  %858 = vmatpush.msra.mxu0 0.0
  %859 = vmatpush.msra.mxu0 0.0
  %860 = vmatpush.msra.mxu0 0.0
  %861 = vmatpush.msra.mxu0 0.0
  %862 = vmatpush.msra.mxu0 0.0
  %863 = vmatpush.msra.mxu0 0.0
  %864 = vmatpush.msra.mxu0 0.0
  %865 = vmatpush.msra.mxu0 0.0
  %866 = vmatpush.msra.mxu0 0.0
  %867 = vmatpush.msra.mxu0 0.0
  %868 = vmatpush.msra.mxu0 0.0
  %869 = vmatpush.msra.mxu0 %v762
  %870 = vmatpush.msra.mxu0 %v759
  %871 = vmatmul.f32.gmra.mxu0 %v847
  %v872 = vpop.f32.mrf.mxu0
  %v873 = vadd.f32 %v836, %v872
  %874 = vmatmul.f32.gmra.mxu0 %v849
  %v875 = vpop.f32.mrf.mxu0
  %v876 = vadd.f32 %v839, %v875
  %877 = vmatmul.f32.gmra.mxu0 %v851
  %v878 = vpop.f32.mrf.mxu0
  %v879 = vadd.f32 %v842, %v878
  %880 = vmatmul.f32.gmra.mxu0 %v853
  %v881 = vpop.f32.mrf.mxu0
  %v882 = vadd.f32 %v845, %v881
  %883 = vdwg.mxu0
  %s884 = scalar_lea.vmem %s2, 96
  %v885 = vld [vmem:[%s884] sm:$0xff]
  %v886 = vld [vmem:[%s884 + $0x8] sm:$0xff]
  %v887 = vld [vmem:[%s884 + $0x10] sm:$0xff]
  %v888 = vld [vmem:[%s884 + $0x18] sm:$0xff]
  %v889 = vld [vmem:[%s884 + $0x20] sm:$0xff]
  %v890 = vld [vmem:[%s884 + $0x28] sm:$0x3]
  %v892 = vsel %vm129, %v890, 0
  %894 = vmatpush.msra.mxu0 0.0
  %895 = vmatpush.msra.mxu0 0.0
  %896 = vmatpush.msra.mxu0 0.0
  %897 = vmatpush.msra.mxu0 0.0
  %898 = vmatpush.msra.mxu0 0.0
  %899 = vmatpush.msra.mxu0 0.0
  %900 = vmatpush.msra.mxu0 0.0
  %901 = vmatpush.msra.mxu0 0.0
  %902 = vmatpush.msra.mxu0 0.0
  %903 = vmatpush.msra.mxu0 0.0
  %904 = vmatpush.msra.mxu0 %v892
  %905 = vmatpush.msra.mxu0 %v889
  %906 = vmatpush.msra.mxu0 %v888
  %907 = vmatpush.msra.mxu0 %v887
  %908 = vmatpush.msra.mxu0 %v886
  %909 = vmatpush.msra.mxu0 %v885
  %910 = vmatmul.f32.gmra.mxu0 %v733
  %v911 = vpop.f32.mrf.mxu0
  %v912 = vadd.f32 0.0, %v911
  %913 = vmatmul.f32.gmra.mxu0 %v736
  %v914 = vpop.f32.mrf.mxu0
  %v915 = vadd.f32 0.0, %v914
  %916 = vdwg.mxu0
  %917 = vrot.lane.b32.xlu0 %v722, 96
  %v918 = vpop.permute.xlu0 %917
  %919 = vrot.lane.b32.xlu0 %v723, 96
  %v920 = vpop.permute.xlu0 %919
  %921 = vrot.lane.b32.xlu0 %v724, 96
  %v922 = vpop.permute.xlu0 %921
  %923 = vrot.lane.b32.xlu0 %v725, 96
  %v924 = vpop.permute.xlu0 %923
  %v925 = vsel %vm809, %v918, 0
  %v927 = vsel %vm809, %v920, 0
  %v929 = vsel %vm809, %v922, 0
  %v931 = vsel %vm809, %v924, 0
  %933 = vmatpush.msra.mxu0 0.0
  %934 = vmatpush.msra.mxu0 0.0
  %935 = vmatpush.msra.mxu0 0.0
  %936 = vmatpush.msra.mxu0 0.0
  %937 = vmatpush.msra.mxu0 0.0
  %938 = vmatpush.msra.mxu0 0.0
  %939 = vmatpush.msra.mxu0 0.0
  %940 = vmatpush.msra.mxu0 0.0
  %941 = vmatpush.msra.mxu0 0.0
  %942 = vmatpush.msra.mxu0 0.0
  %943 = vmatpush.msra.mxu0 0.0
  %944 = vmatpush.msra.mxu0 0.0
  %945 = vmatpush.msra.mxu0 0.0
  %946 = vmatpush.msra.mxu0 0.0
  %947 = vmatpush.msra.mxu0 %v915
  %948 = vmatpush.msra.mxu0 %v912
  %949 = vmatmul.f32.gmra.mxu0 %v925
  %v950 = vpop.f32.mrf.mxu0
  %v951 = vadd.f32 0.0, %v950
  %952 = vmatmul.f32.gmra.mxu0 %v927
  %v953 = vpop.f32.mrf.mxu0
  %v954 = vadd.f32 0.0, %v953
  %955 = vmatmul.f32.gmra.mxu0 %v929
  %v956 = vpop.f32.mrf.mxu0
  %v957 = vadd.f32 0.0, %v956
  %958 = vmatmul.f32.gmra.mxu0 %v931
  %v959 = vpop.f32.mrf.mxu0
  %v960 = vadd.f32 0.0, %v959
  %961 = vdwg.mxu0
  %v962 = vadd.f32 %v873, %v951
  %v963 = vadd.f32 %v876, %v954
  %v964 = vadd.f32 %v879, %v957
  %v965 = vadd.f32 %v882, %v960
  %s966 = scalar_lea.vmem %s2, 144
  %v967 = vld [vmem:[%s966] sm:$0xff]
  %v968 = vld [vmem:[%s966 + $0x8] sm:$0xff]
  %v969 = vld [vmem:[%s966 + $0x10] sm:$0xff]
  %v970 = vld [vmem:[%s966 + $0x18] sm:$0xff]
  %v971 = vld [vmem:[%s966 + $0x20] sm:$0xff]
  %v972 = vld [vmem:[%s966 + $0x28] sm:$0x3]
  %v974 = vsel %vm129, %v972, 0
  %976 = vmatpush.msra.mxu0 0.0
  %977 = vmatpush.msra.mxu0 0.0
  %978 = vmatpush.msra.mxu0 0.0
  %979 = vmatpush.msra.mxu0 0.0
  %980 = vmatpush.msra.mxu0 0.0
  %981 = vmatpush.msra.mxu0 0.0
  %982 = vmatpush.msra.mxu0 0.0
  %983 = vmatpush.msra.mxu0 0.0
  %984 = vmatpush.msra.mxu0 0.0
  %985 = vmatpush.msra.mxu0 0.0
  %986 = vmatpush.msra.mxu0 %v974
  %987 = vmatpush.msra.mxu0 %v971
  %988 = vmatpush.msra.mxu0 %v970
  %989 = vmatpush.msra.mxu0 %v969
  %990 = vmatpush.msra.mxu0 %v968
  %991 = vmatpush.msra.mxu0 %v967
  %992 = vmatmul.f32.gmra.mxu0 %v733
  %v993 = vpop.f32.mrf.mxu0
  %v994 = vadd.f32 0.0, %v993
  %995 = vmatmul.f32.gmra.mxu0 %v736
  %v996 = vpop.f32.mrf.mxu0
  %v997 = vadd.f32 0.0, %v996
  %998 = vdwg.mxu0
  %999 = vrot.lane.b32.xlu0 %v722, 80
  %v1000 = vpop.permute.xlu0 %999
  %1001 = vrot.lane.b32.xlu0 %v723, 80
  %v1002 = vpop.permute.xlu0 %1001
  %1003 = vrot.lane.b32.xlu0 %v724, 80
  %v1004 = vpop.permute.xlu0 %1003
  %1005 = vrot.lane.b32.xlu0 %v725, 80
  %v1006 = vpop.permute.xlu0 %1005
  %v1007 = vsel %vm809, %v1000, 0
  %v1009 = vsel %vm809, %v1002, 0
  %v1011 = vsel %vm809, %v1004, 0
  %v1013 = vsel %vm809, %v1006, 0
  %1015 = vmatpush.msra.mxu0 0.0
  %1016 = vmatpush.msra.mxu0 0.0
  %1017 = vmatpush.msra.mxu0 0.0
  %1018 = vmatpush.msra.mxu0 0.0
  %1019 = vmatpush.msra.mxu0 0.0
  %1020 = vmatpush.msra.mxu0 0.0
  %1021 = vmatpush.msra.mxu0 0.0
  %1022 = vmatpush.msra.mxu0 0.0
  %1023 = vmatpush.msra.mxu0 0.0
  %1024 = vmatpush.msra.mxu0 0.0
  %1025 = vmatpush.msra.mxu0 0.0
  %1026 = vmatpush.msra.mxu0 0.0
  %1027 = vmatpush.msra.mxu0 0.0
  %1028 = vmatpush.msra.mxu0 0.0
  %1029 = vmatpush.msra.mxu0 %v997
  %1030 = vmatpush.msra.mxu0 %v994
  %1031 = vmatmul.f32.gmra.mxu0 %v1007
  %v1032 = vpop.f32.mrf.mxu0
  %v1033 = vadd.f32 0.0, %v1032
  %1034 = vmatmul.f32.gmra.mxu0 %v1009
  %v1035 = vpop.f32.mrf.mxu0
  %v1036 = vadd.f32 0.0, %v1035
  %1037 = vmatmul.f32.gmra.mxu0 %v1011
  %v1038 = vpop.f32.mrf.mxu0
  %v1039 = vadd.f32 0.0, %v1038
  %1040 = vmatmul.f32.gmra.mxu0 %v1013
  %v1041 = vpop.f32.mrf.mxu0
  %v1042 = vadd.f32 0.0, %v1041
  %1043 = vdwg.mxu0
  %v1044 = vadd.f32 %v962, %v1033
  %v1045 = vadd.f32 %v963, %v1036
  %v1046 = vadd.f32 %v964, %v1039
  %v1047 = vadd.f32 %v965, %v1042
  %s1048 = scalar_lea.vmem %s2, 192
  %v1049 = vld [vmem:[%s1048] sm:$0xff]
  %v1050 = vld [vmem:[%s1048 + $0x8] sm:$0xff]
  %v1051 = vld [vmem:[%s1048 + $0x10] sm:$0xff]
  %v1052 = vld [vmem:[%s1048 + $0x18] sm:$0xff]
  %v1053 = vld [vmem:[%s1048 + $0x20] sm:$0xff]
  %v1054 = vld [vmem:[%s1048 + $0x28] sm:$0x3]
  %v1056 = vsel %vm129, %v1054, 0
  %1058 = vmatpush.msra.mxu0 0.0
  %1059 = vmatpush.msra.mxu0 0.0
  %1060 = vmatpush.msra.mxu0 0.0
  %1061 = vmatpush.msra.mxu0 0.0
  %1062 = vmatpush.msra.mxu0 0.0
  %1063 = vmatpush.msra.mxu0 0.0
  %1064 = vmatpush.msra.mxu0 0.0
  %1065 = vmatpush.msra.mxu0 0.0
  %1066 = vmatpush.msra.mxu0 0.0
  %1067 = vmatpush.msra.mxu0 0.0
  %1068 = vmatpush.msra.mxu0 %v1056
  %1069 = vmatpush.msra.mxu0 %v1053
  %1070 = vmatpush.msra.mxu0 %v1052
  %1071 = vmatpush.msra.mxu0 %v1051
  %1072 = vmatpush.msra.mxu0 %v1050
  %1073 = vmatpush.msra.mxu0 %v1049
  %1074 = vmatmul.f32.gmra.mxu0 %v733
  %v1075 = vpop.f32.mrf.mxu0
  %v1076 = vadd.f32 0.0, %v1075
  %1077 = vmatmul.f32.gmra.mxu0 %v736
  %v1078 = vpop.f32.mrf.mxu0
  %v1079 = vadd.f32 0.0, %v1078
  %1080 = vdwg.mxu0
  %1081 = vrot.lane.b32.xlu0 %v722, 64
  %v1082 = vpop.permute.xlu0 %1081
  %1083 = vrot.lane.b32.xlu0 %v723, 64
  %v1084 = vpop.permute.xlu0 %1083
  %1085 = vrot.lane.b32.xlu0 %v724, 64
  %v1086 = vpop.permute.xlu0 %1085
  %1087 = vrot.lane.b32.xlu0 %v725, 64
  %v1088 = vpop.permute.xlu0 %1087
  %v1089 = vsel %vm809, %v1082, 0
  %v1091 = vsel %vm809, %v1084, 0
  %v1093 = vsel %vm809, %v1086, 0
  %v1095 = vsel %vm809, %v1088, 0
  %1097 = vmatpush.msra.mxu0 0.0
  %1098 = vmatpush.msra.mxu0 0.0
  %1099 = vmatpush.msra.mxu0 0.0
  %1100 = vmatpush.msra.mxu0 0.0
  %1101 = vmatpush.msra.mxu0 0.0
  %1102 = vmatpush.msra.mxu0 0.0
  %1103 = vmatpush.msra.mxu0 0.0
  %1104 = vmatpush.msra.mxu0 0.0
  %1105 = vmatpush.msra.mxu0 0.0
  %1106 = vmatpush.msra.mxu0 0.0
  %1107 = vmatpush.msra.mxu0 0.0
  %1108 = vmatpush.msra.mxu0 0.0
  %1109 = vmatpush.msra.mxu0 0.0
  %1110 = vmatpush.msra.mxu0 0.0
  %1111 = vmatpush.msra.mxu0 %v1079
  %1112 = vmatpush.msra.mxu0 %v1076
  %1113 = vmatmul.f32.gmra.mxu0 %v1089
  %v1114 = vpop.f32.mrf.mxu0
  %v1115 = vadd.f32 0.0, %v1114
  %1116 = vmatmul.f32.gmra.mxu0 %v1091
  %v1117 = vpop.f32.mrf.mxu0
  %v1118 = vadd.f32 0.0, %v1117
  %1119 = vmatmul.f32.gmra.mxu0 %v1093
  %v1120 = vpop.f32.mrf.mxu0
  %v1121 = vadd.f32 0.0, %v1120
  %1122 = vmatmul.f32.gmra.mxu0 %v1095
  %v1123 = vpop.f32.mrf.mxu0
  %v1124 = vadd.f32 0.0, %v1123
  %1125 = vdwg.mxu0
  %v1126 = vadd.f32 %v1044, %v1115
  %v1127 = vadd.f32 %v1045, %v1118
  %v1128 = vadd.f32 %v1046, %v1121
  %v1129 = vadd.f32 %v1047, %v1124
  %s1130 = scalar_lea.vmem %s2, 240
  %v1131 = vld [vmem:[%s1130] sm:$0xff]
  %v1132 = vld [vmem:[%s1130 + $0x8] sm:$0xff]
  %v1133 = vld [vmem:[%s1130 + $0x10] sm:$0xff]
  %v1134 = vld [vmem:[%s1130 + $0x18] sm:$0xff]
  %v1135 = vld [vmem:[%s1130 + $0x20] sm:$0xff]
  %v1136 = vld [vmem:[%s1130 + $0x28] sm:$0x3]
  %v1138 = vsel %vm129, %v1136, 0
  %1140 = vmatpush.msra.mxu0 0.0
  %1141 = vmatpush.msra.mxu0 0.0
  %1142 = vmatpush.msra.mxu0 0.0
  %1143 = vmatpush.msra.mxu0 0.0
  %1144 = vmatpush.msra.mxu0 0.0
  %1145 = vmatpush.msra.mxu0 0.0
  %1146 = vmatpush.msra.mxu0 0.0
  %1147 = vmatpush.msra.mxu0 0.0
  %1148 = vmatpush.msra.mxu0 0.0
  %1149 = vmatpush.msra.mxu0 0.0
  %1150 = vmatpush.msra.mxu0 %v1138
  %1151 = vmatpush.msra.mxu0 %v1135
  %1152 = vmatpush.msra.mxu0 %v1134
  %1153 = vmatpush.msra.mxu0 %v1133
  %1154 = vmatpush.msra.mxu0 %v1132
  %1155 = vmatpush.msra.mxu0 %v1131
  %1156 = vmatmul.f32.gmra.mxu0 %v733
  %v1157 = vpop.f32.mrf.mxu0
  %v1158 = vadd.f32 0.0, %v1157
  %1159 = vmatmul.f32.gmra.mxu0 %v736
  %v1160 = vpop.f32.mrf.mxu0
  %v1161 = vadd.f32 0.0, %v1160
  %1162 = vdwg.mxu0
  %1163 = vrot.lane.b32.xlu0 %v722, 48
  %v1164 = vpop.permute.xlu0 %1163
  %1165 = vrot.lane.b32.xlu0 %v723, 48
  %v1166 = vpop.permute.xlu0 %1165
  %1167 = vrot.lane.b32.xlu0 %v724, 48
  %v1168 = vpop.permute.xlu0 %1167
  %1169 = vrot.lane.b32.xlu0 %v725, 48
  %v1170 = vpop.permute.xlu0 %1169
  %v1171 = vsel %vm809, %v1164, 0
  %v1173 = vsel %vm809, %v1166, 0
  %v1175 = vsel %vm809, %v1168, 0
  %v1177 = vsel %vm809, %v1170, 0
  %1179 = vmatpush.msra.mxu0 0.0
  %1180 = vmatpush.msra.mxu0 0.0
  %1181 = vmatpush.msra.mxu0 0.0
  %1182 = vmatpush.msra.mxu0 0.0
  %1183 = vmatpush.msra.mxu0 0.0
  %1184 = vmatpush.msra.mxu0 0.0
  %1185 = vmatpush.msra.mxu0 0.0
  %1186 = vmatpush.msra.mxu0 0.0
  %1187 = vmatpush.msra.mxu0 0.0
  %1188 = vmatpush.msra.mxu0 0.0
  %1189 = vmatpush.msra.mxu0 0.0
  %1190 = vmatpush.msra.mxu0 0.0
  %1191 = vmatpush.msra.mxu0 0.0
  %1192 = vmatpush.msra.mxu0 0.0
  %1193 = vmatpush.msra.mxu0 %v1161
  %1194 = vmatpush.msra.mxu0 %v1158
  %1195 = vmatmul.f32.gmra.mxu0 %v1171
  %v1196 = vpop.f32.mrf.mxu0
  %v1197 = vadd.f32 0.0, %v1196
  %1198 = vmatmul.f32.gmra.mxu0 %v1173
  %v1199 = vpop.f32.mrf.mxu0
  %v1200 = vadd.f32 0.0, %v1199
  %1201 = vmatmul.f32.gmra.mxu0 %v1175
  %v1202 = vpop.f32.mrf.mxu0
  %v1203 = vadd.f32 0.0, %v1202
  %1204 = vmatmul.f32.gmra.mxu0 %v1177
  %v1205 = vpop.f32.mrf.mxu0
  %v1206 = vadd.f32 0.0, %v1205
  %1207 = vdwg.mxu0
  %v1208 = vadd.f32 %v1126, %v1197
  %v1209 = vadd.f32 %v1127, %v1200
  %v1210 = vadd.f32 %v1128, %v1203
  %v1211 = vadd.f32 %v1129, %v1206
  %s1212 = scalar_lea.vmem %s2, 288
  %v1213 = vld [vmem:[%s1212] sm:$0xff]
  %v1214 = vld [vmem:[%s1212 + $0x8] sm:$0xff]
  %v1215 = vld [vmem:[%s1212 + $0x10] sm:$0xff]
  %v1216 = vld [vmem:[%s1212 + $0x18] sm:$0xff]
  %v1217 = vld [vmem:[%s1212 + $0x20] sm:$0xff]
  %v1218 = vld [vmem:[%s1212 + $0x28] sm:$0x3]
  %v1220 = vsel %vm129, %v1218, 0
  %1222 = vmatpush.msra.mxu0 0.0
  %1223 = vmatpush.msra.mxu0 0.0
  %1224 = vmatpush.msra.mxu0 0.0
  %1225 = vmatpush.msra.mxu0 0.0
  %1226 = vmatpush.msra.mxu0 0.0
  %1227 = vmatpush.msra.mxu0 0.0
  %1228 = vmatpush.msra.mxu0 0.0
  %1229 = vmatpush.msra.mxu0 0.0
  %1230 = vmatpush.msra.mxu0 0.0
  %1231 = vmatpush.msra.mxu0 0.0
  %1232 = vmatpush.msra.mxu0 %v1220
  %1233 = vmatpush.msra.mxu0 %v1217
  %1234 = vmatpush.msra.mxu0 %v1216
  %1235 = vmatpush.msra.mxu0 %v1215
  %1236 = vmatpush.msra.mxu0 %v1214
  %1237 = vmatpush.msra.mxu0 %v1213
  %1238 = vmatmul.f32.gmra.mxu0 %v733
  %v1239 = vpop.f32.mrf.mxu0
  %v1240 = vadd.f32 0.0, %v1239
  %1241 = vmatmul.f32.gmra.mxu0 %v736
  %v1242 = vpop.f32.mrf.mxu0
  %v1243 = vadd.f32 0.0, %v1242
  %1244 = vdwg.mxu0
  %1245 = vrot.lane.b32.xlu0 %v722, 32
  %v1246 = vpop.permute.xlu0 %1245
  %1247 = vrot.lane.b32.xlu0 %v723, 32
  %v1248 = vpop.permute.xlu0 %1247
  %1249 = vrot.lane.b32.xlu0 %v724, 32
  %v1250 = vpop.permute.xlu0 %1249
  %1251 = vrot.lane.b32.xlu0 %v725, 32
  %v1252 = vpop.permute.xlu0 %1251
  %v1253 = vsel %vm809, %v1246, 0
  %v1255 = vsel %vm809, %v1248, 0
  %v1257 = vsel %vm809, %v1250, 0
  %v1259 = vsel %vm809, %v1252, 0
  %1261 = vmatpush.msra.mxu0 0.0
  %1262 = vmatpush.msra.mxu0 0.0
  %1263 = vmatpush.msra.mxu0 0.0
  %1264 = vmatpush.msra.mxu0 0.0
  %1265 = vmatpush.msra.mxu0 0.0
  %1266 = vmatpush.msra.mxu0 0.0
  %1267 = vmatpush.msra.mxu0 0.0
  %1268 = vmatpush.msra.mxu0 0.0
  %1269 = vmatpush.msra.mxu0 0.0
  %1270 = vmatpush.msra.mxu0 0.0
  %1271 = vmatpush.msra.mxu0 0.0
  %1272 = vmatpush.msra.mxu0 0.0
  %1273 = vmatpush.msra.mxu0 0.0
  %1274 = vmatpush.msra.mxu0 0.0
  %1275 = vmatpush.msra.mxu0 %v1243
  %1276 = vmatpush.msra.mxu0 %v1240
  %1277 = vmatmul.f32.gmra.mxu0 %v1253
  %v1278 = vpop.f32.mrf.mxu0
  %v1279 = vadd.f32 0.0, %v1278
  %1280 = vmatmul.f32.gmra.mxu0 %v1255
  %v1281 = vpop.f32.mrf.mxu0
  %v1282 = vadd.f32 0.0, %v1281
  %1283 = vmatmul.f32.gmra.mxu0 %v1257
  %v1284 = vpop.f32.mrf.mxu0
  %v1285 = vadd.f32 0.0, %v1284
  %1286 = vmatmul.f32.gmra.mxu0 %v1259
  %v1287 = vpop.f32.mrf.mxu0
  %v1288 = vadd.f32 0.0, %v1287
  %1289 = vdwg.mxu0
  %v1290 = vadd.f32 %v1208, %v1279
  %v1291 = vadd.f32 %v1209, %v1282
  %v1292 = vadd.f32 %v1210, %v1285
  %v1293 = vadd.f32 %v1211, %v1288
  %v1294 = vld [vmem:[%s1 + $0xc0] sm:$0xff]
  %v1295 = vld [vmem:[%s1 + $0xc8] sm:$0xff]
  %v1296 = vld [vmem:[%s1 + $0xd0] sm:$0xff]
  %v1297 = vld [vmem:[%s1 + $0xd8] sm:$0xff]
  %1299 = vset.pattern.permute.xlu0 0
  %1300 = vperm.xlu0 %1299, %v1294
  %v1301 = vpop.permute.xlu0 %1300
  %1304 = vset.pattern.permute.xlu0 0
  %1305 = vperm.xlu0 %1304, %v1295
  %v1306 = vpop.permute.xlu0 %1305
  %1309 = vset.pattern.permute.xlu0 0
  %1310 = vperm.xlu0 %1309, %v1296
  %v1311 = vpop.permute.xlu0 %1310
  %1314 = vset.pattern.permute.xlu0 0
  %1315 = vperm.xlu0 %1314, %v1297
  %v1316 = vpop.permute.xlu0 %1315
  %v1318 = vadd.f32 %v1290, %v1301
  %v1319 = vadd.f32 %v1291, %v1306
  %v1320 = vadd.f32 %v1292, %v1311
  %v1321 = vadd.f32 %v1293, %v1316
  %v1322 = vld [vmem:[%s1 + $0xe0] sm:$0xff]
  %v1323 = vld [vmem:[%s1 + $0xe8] sm:$0xff]
  %v1324 = vld [vmem:[%s1 + $0xf0] sm:$0xff]
  %v1325 = vld [vmem:[%s1 + $0xf8] sm:$0xff]
  %v1326 = vld [vmem:[%s1 + $0x100] sm:$0xff]
  %v1327 = vld [vmem:[%s1 + $0x108] sm:$0xff]
  %v1328 = vld [vmem:[%s1 + $0x110] sm:$0xff]
  %v1329 = vld [vmem:[%s1 + $0x118] sm:$0xff]
  %v1330 = vld [vmem:[%s1 + $0x120] sm:$0xff]
  %v1331 = vld [vmem:[%s1 + $0x128] sm:$0xff]
  %v1332 = vld [vmem:[%s1 + $0x130] sm:$0xff]
  %v1333 = vld [vmem:[%s1 + $0x138] sm:$0xff]
  %v1334 = vld [vmem:[%s1 + $0x140] sm:$0xff]
  %v1335 = vld [vmem:[%s1 + $0x148] sm:$0xff]
  %vm1336 = vcmask 261120
  %v1338 = vsel %vm1336, %v1322, 0
  %v1341 = vsel %vm1336, %v1323, 0
  %v1344 = vsel %vm1336, %v1324, 0
  %v1347 = vsel %vm1336, %v1325, 0
  %v1350 = vsel %vm1336, %v1326, 0
  %v1353 = vsel %vm1336, %v1327, 0
  %v1356 = vsel %vm1336, %v1328, 0
  %v1359 = vsel %vm1336, %v1329, 0
  %v1362 = vsel %vm1336, %v1330, 0
  %v1365 = vsel %vm1336, %v1331, 0
  %v1368 = vsel %vm1336, %v1332, 0
  %v1371 = vsel %vm1336, %v1333, 0
  %v1374 = vsel %vm1336, %v1334, 0
  %v1377 = vsel %vm1336, %v1335, 0
  %1379 = vmatpush.msra.mxu0 0.0
  %1380 = vmatpush.msra.mxu0 0.0
  %1381 = vmatpush.msra.mxu0 0.0
  %1382 = vmatpush.msra.mxu0 0.0
  %1383 = vmatpush.msra.mxu0 0.0
  %1384 = vmatpush.msra.mxu0 0.0
  %1385 = vmatpush.msra.mxu0 0.0
  %1386 = vmatpush.msra.mxu0 0.0
  %1387 = vmatpush.msra.mxu0 0.0
  %1388 = vmatpush.msra.mxu0 0.0
  %1389 = vmatpush.msra.mxu0 0.0
  %1390 = vmatpush.msra.mxu0 0.0
  %1391 = vmatpush.msra.mxu0 %v1321
  %1392 = vmatpush.msra.mxu0 %v1320
  %1393 = vmatpush.msra.mxu0 %v1319
  %1394 = vmatpush.msra.mxu0 %v1318
  %1395 = vmatmul.f32.gmra.mxu0 %v1338
  %v1396 = vpop.f32.mrf.mxu0
  %v1397 = vadd.f32 0.0, %v1396
  %1398 = vmatmul.f32.gmra.mxu0 %v1341
  %v1399 = vpop.f32.mrf.mxu0
  %v1400 = vadd.f32 0.0, %v1399
  %1401 = vmatmul.f32.gmra.mxu0 %v1344
  %v1402 = vpop.f32.mrf.mxu0
  %v1403 = vadd.f32 0.0, %v1402
  %1404 = vmatmul.f32.gmra.mxu0 %v1347
  %v1405 = vpop.f32.mrf.mxu0
  %v1406 = vadd.f32 0.0, %v1405
  %1407 = vmatmul.f32.gmra.mxu0 %v1350
  %v1408 = vpop.f32.mrf.mxu0
  %v1409 = vadd.f32 0.0, %v1408
  %1410 = vmatmul.f32.gmra.mxu0 %v1353
  %v1411 = vpop.f32.mrf.mxu0
  %v1412 = vadd.f32 0.0, %v1411
  %1413 = vmatmul.f32.gmra.mxu0 %v1356
  %v1414 = vpop.f32.mrf.mxu0
  %v1415 = vadd.f32 0.0, %v1414
  %1416 = vmatmul.f32.gmra.mxu0 %v1359
  %v1417 = vpop.f32.mrf.mxu0
  %v1418 = vadd.f32 0.0, %v1417
  %1419 = vmatmul.f32.gmra.mxu0 %v1362
  %v1420 = vpop.f32.mrf.mxu0
  %v1421 = vadd.f32 0.0, %v1420
  %1422 = vmatmul.f32.gmra.mxu0 %v1365
  %v1423 = vpop.f32.mrf.mxu0
  %v1424 = vadd.f32 0.0, %v1423
  %1425 = vmatmul.f32.gmra.mxu0 %v1368
  %v1426 = vpop.f32.mrf.mxu0
  %v1427 = vadd.f32 0.0, %v1426
  %1428 = vmatmul.f32.gmra.mxu0 %v1371
  %v1429 = vpop.f32.mrf.mxu0
  %v1430 = vadd.f32 0.0, %v1429
  %1431 = vmatmul.f32.gmra.mxu0 %v1374
  %v1432 = vpop.f32.mrf.mxu0
  %v1433 = vadd.f32 0.0, %v1432
  %1434 = vmatmul.f32.gmra.mxu0 %v1377
  %v1435 = vpop.f32.mrf.mxu0
  %v1436 = vadd.f32 0.0, %v1435
  %1437 = vdwg.mxu0
  %v1438 = vld [vmem:[%s1 + $0x150] sm:$0xff]
  %v1439 = vld [vmem:[%s1 + $0x158] sm:$0xff]
  %1441 = vset.pattern.permute.xlu0 0
  %1442 = vperm.xlu0 %1441, %v1438
  %v1443 = vpop.permute.xlu0 %1442
  %1446 = vset.pattern.permute.xlu0 0
  %1447 = vperm.xlu0 %1446, %v1439
  %v1448 = vpop.permute.xlu0 %1447
  %v1450 = vadd.f32 %v1397, %v1443
  %v1451 = vadd.f32 %v1400, %v1448
  %v1452 = vld [vmem:[%s3] sm:$0x3]
  %1453 = vset.pattern.permute.xlu0 1
  %1454 = vperm.xlu0 %1453, %v1438
  %v1455 = vpop.permute.xlu0 %1454
  %1457 = vset.pattern.permute.xlu0 1
  %1458 = vperm.xlu0 %1457, %v1439
  %v1459 = vpop.permute.xlu0 %1458
  %v1461 = vadd.f32 %v1403, %v1455
  %v1462 = vadd.f32 %v1406, %v1459
  %s1463 = scalar_lea.vmem %s3, 2
  %v1464 = vld [vmem:[%s1463] sm:$0x3]
  %vm1465 = vcmask 15360
  %v1467 = vsel %vm1465, %v1461, 0
  %v1470 = vsel %vm1465, %v1462, 0
  %v1473 = vsel %vm129, %v1464, 0
  %1475 = vmatpush.msra.mxu0 0.0
  %1476 = vmatpush.msra.mxu0 0.0
  %1477 = vmatpush.msra.mxu0 0.0
  %1478 = vmatpush.msra.mxu0 0.0
  %1479 = vmatpush.msra.mxu0 0.0
  %1480 = vmatpush.msra.mxu0 0.0
  %1481 = vmatpush.msra.mxu0 0.0
  %1482 = vmatpush.msra.mxu0 0.0
  %1483 = vmatpush.msra.mxu0 0.0
  %1484 = vmatpush.msra.mxu0 0.0
  %1485 = vmatpush.msra.mxu0 0.0
  %1486 = vmatpush.msra.mxu0 0.0
  %1487 = vmatpush.msra.mxu0 0.0
  %1488 = vmatpush.msra.mxu0 0.0
  %1489 = vmatpush.msra.mxu0 0.0
  %1490 = vmatpush.msra.mxu0 %v1473
  %1491 = vmatmul.f32.gmra.mxu0 %v1467
  %v1492 = vpop.f32.mrf.mxu0
  %v1493 = vadd.f32 0.0, %v1492
  %1494 = vmatmul.f32.gmra.mxu0 %v1470
  %v1495 = vpop.f32.mrf.mxu0
  %v1496 = vadd.f32 0.0, %v1495
  %1497 = vdwg.mxu0
  %v1499 = vsel %vm1465, %v1450, 0
  %v1502 = vsel %vm1465, %v1451, 0
  %v1505 = vsel %vm129, %v1452, 0
  %1507 = vmatpush.msra.mxu0 0.0
  %1508 = vmatpush.msra.mxu0 0.0
  %1509 = vmatpush.msra.mxu0 0.0
  %1510 = vmatpush.msra.mxu0 0.0
  %1511 = vmatpush.msra.mxu0 0.0
  %1512 = vmatpush.msra.mxu0 0.0
  %1513 = vmatpush.msra.mxu0 0.0
  %1514 = vmatpush.msra.mxu0 0.0
  %1515 = vmatpush.msra.mxu0 0.0
  %1516 = vmatpush.msra.mxu0 0.0
  %1517 = vmatpush.msra.mxu0 0.0
  %1518 = vmatpush.msra.mxu0 0.0
  %1519 = vmatpush.msra.mxu0 0.0
  %1520 = vmatpush.msra.mxu0 0.0
  %1521 = vmatpush.msra.mxu0 0.0
  %1522 = vmatpush.msra.mxu0 %v1505
  %1523 = vmatmul.f32.gmra.mxu0 %v1499
  %v1524 = vpop.f32.mrf.mxu0
  %v1525 = vadd.f32 %v1493, %v1524
  %1526 = vmatmul.f32.gmra.mxu0 %v1502
  %v1527 = vpop.f32.mrf.mxu0
  %v1528 = vadd.f32 %v1496, %v1527
  %1529 = vdwg.mxu0
  %1530 = vset.pattern.permute.xlu0 2
  %1531 = vperm.xlu0 %1530, %v1438
  %v1532 = vpop.permute.xlu0 %1531
  %1534 = vset.pattern.permute.xlu0 2
  %1535 = vperm.xlu0 %1534, %v1439
  %v1536 = vpop.permute.xlu0 %1535
  %v1538 = vadd.f32 %v1409, %v1532
  %v1539 = vadd.f32 %v1412, %v1536
  %s1540 = scalar_lea.vmem %s3, 4
  %v1541 = vld [vmem:[%s1540] sm:$0x3]
  %v1543 = vsel %vm1465, %v1538, 0
  %v1546 = vsel %vm1465, %v1539, 0
  %v1549 = vsel %vm129, %v1541, 0
  %1551 = vmatpush.msra.mxu0 0.0
  %1552 = vmatpush.msra.mxu0 0.0
  %1553 = vmatpush.msra.mxu0 0.0
  %1554 = vmatpush.msra.mxu0 0.0
  %1555 = vmatpush.msra.mxu0 0.0
  %1556 = vmatpush.msra.mxu0 0.0
  %1557 = vmatpush.msra.mxu0 0.0
  %1558 = vmatpush.msra.mxu0 0.0
  %1559 = vmatpush.msra.mxu0 0.0
  %1560 = vmatpush.msra.mxu0 0.0
  %1561 = vmatpush.msra.mxu0 0.0
  %1562 = vmatpush.msra.mxu0 0.0
  %1563 = vmatpush.msra.mxu0 0.0
  %1564 = vmatpush.msra.mxu0 0.0
  %1565 = vmatpush.msra.mxu0 0.0
  %1566 = vmatpush.msra.mxu0 %v1549
  %1567 = vmatmul.f32.gmra.mxu0 %v1543
  %v1568 = vpop.f32.mrf.mxu0
  %v1569 = vadd.f32 0.0, %v1568
  %1570 = vmatmul.f32.gmra.mxu0 %v1546
  %v1571 = vpop.f32.mrf.mxu0
  %v1572 = vadd.f32 0.0, %v1571
  %1573 = vdwg.mxu0
  %v1574 = vadd.f32 %v1525, %v1569
  %v1575 = vadd.f32 %v1528, %v1572
  %1576 = vset.pattern.permute.xlu0 3
  %1577 = vperm.xlu0 %1576, %v1438
  %v1578 = vpop.permute.xlu0 %1577
  %1580 = vset.pattern.permute.xlu0 3
  %1581 = vperm.xlu0 %1580, %v1439
  %v1582 = vpop.permute.xlu0 %1581
  %v1584 = vadd.f32 %v1415, %v1578
  %v1585 = vadd.f32 %v1418, %v1582
  %s1586 = scalar_lea.vmem %s3, 6
  %v1587 = vld [vmem:[%s1586] sm:$0x3]
  %v1589 = vsel %vm1465, %v1584, 0
  %v1592 = vsel %vm1465, %v1585, 0
  %v1595 = vsel %vm129, %v1587, 0
  %1597 = vmatpush.msra.mxu0 0.0
  %1598 = vmatpush.msra.mxu0 0.0
  %1599 = vmatpush.msra.mxu0 0.0
  %1600 = vmatpush.msra.mxu0 0.0
  %1601 = vmatpush.msra.mxu0 0.0
  %1602 = vmatpush.msra.mxu0 0.0
  %1603 = vmatpush.msra.mxu0 0.0
  %1604 = vmatpush.msra.mxu0 0.0
  %1605 = vmatpush.msra.mxu0 0.0
  %1606 = vmatpush.msra.mxu0 0.0
  %1607 = vmatpush.msra.mxu0 0.0
  %1608 = vmatpush.msra.mxu0 0.0
  %1609 = vmatpush.msra.mxu0 0.0
  %1610 = vmatpush.msra.mxu0 0.0
  %1611 = vmatpush.msra.mxu0 0.0
  %1612 = vmatpush.msra.mxu0 %v1595
  %1613 = vmatmul.f32.gmra.mxu0 %v1589
  %v1614 = vpop.f32.mrf.mxu0
  %v1615 = vadd.f32 0.0, %v1614
  %1616 = vmatmul.f32.gmra.mxu0 %v1592
  %v1617 = vpop.f32.mrf.mxu0
  %v1618 = vadd.f32 0.0, %v1617
  %1619 = vdwg.mxu0
  %v1620 = vadd.f32 %v1574, %v1615
  %v1621 = vadd.f32 %v1575, %v1618
  %1622 = vset.pattern.permute.xlu0 4
  %1623 = vperm.xlu0 %1622, %v1438
  %v1624 = vpop.permute.xlu0 %1623
  %1626 = vset.pattern.permute.xlu0 4
  %1627 = vperm.xlu0 %1626, %v1439
  %v1628 = vpop.permute.xlu0 %1627
  %v1630 = vadd.f32 %v1421, %v1624
  %v1631 = vadd.f32 %v1424, %v1628
  %s1632 = scalar_lea.vmem %s3, 8
  %v1633 = vld [vmem:[%s1632] sm:$0x3]
  %v1635 = vsel %vm1465, %v1630, 0
  %v1638 = vsel %vm1465, %v1631, 0
  %v1641 = vsel %vm129, %v1633, 0
  %1643 = vmatpush.msra.mxu0 0.0
  %1644 = vmatpush.msra.mxu0 0.0
  %1645 = vmatpush.msra.mxu0 0.0
  %1646 = vmatpush.msra.mxu0 0.0
  %1647 = vmatpush.msra.mxu0 0.0
  %1648 = vmatpush.msra.mxu0 0.0
  %1649 = vmatpush.msra.mxu0 0.0
  %1650 = vmatpush.msra.mxu0 0.0
  %1651 = vmatpush.msra.mxu0 0.0
  %1652 = vmatpush.msra.mxu0 0.0
  %1653 = vmatpush.msra.mxu0 0.0
  %1654 = vmatpush.msra.mxu0 0.0
  %1655 = vmatpush.msra.mxu0 0.0
  %1656 = vmatpush.msra.mxu0 0.0
  %1657 = vmatpush.msra.mxu0 0.0
  %1658 = vmatpush.msra.mxu0 %v1641
  %1659 = vmatmul.f32.gmra.mxu0 %v1635
  %v1660 = vpop.f32.mrf.mxu0
  %v1661 = vadd.f32 0.0, %v1660
  %1662 = vmatmul.f32.gmra.mxu0 %v1638
  %v1663 = vpop.f32.mrf.mxu0
  %v1664 = vadd.f32 0.0, %v1663
  %1665 = vdwg.mxu0
  %v1666 = vadd.f32 %v1620, %v1661
  %v1667 = vadd.f32 %v1621, %v1664
  %1668 = vset.pattern.permute.xlu0 5
  %1669 = vperm.xlu0 %1668, %v1438
  %v1670 = vpop.permute.xlu0 %1669
  %1672 = vset.pattern.permute.xlu0 5
  %1673 = vperm.xlu0 %1672, %v1439
  %v1674 = vpop.permute.xlu0 %1673
  %v1676 = vadd.f32 %v1427, %v1670
  %v1677 = vadd.f32 %v1430, %v1674
  %s1678 = scalar_lea.vmem %s3, 10
  %v1679 = vld [vmem:[%s1678] sm:$0x3]
  %v1681 = vsel %vm1465, %v1676, 0
  %v1684 = vsel %vm1465, %v1677, 0
  %v1687 = vsel %vm129, %v1679, 0
  %1689 = vmatpush.msra.mxu0 0.0
  %1690 = vmatpush.msra.mxu0 0.0
  %1691 = vmatpush.msra.mxu0 0.0
  %1692 = vmatpush.msra.mxu0 0.0
  %1693 = vmatpush.msra.mxu0 0.0
  %1694 = vmatpush.msra.mxu0 0.0
  %1695 = vmatpush.msra.mxu0 0.0
  %1696 = vmatpush.msra.mxu0 0.0
  %1697 = vmatpush.msra.mxu0 0.0
  %1698 = vmatpush.msra.mxu0 0.0
  %1699 = vmatpush.msra.mxu0 0.0
  %1700 = vmatpush.msra.mxu0 0.0
  %1701 = vmatpush.msra.mxu0 0.0
  %1702 = vmatpush.msra.mxu0 0.0
  %1703 = vmatpush.msra.mxu0 0.0
  %1704 = vmatpush.msra.mxu0 %v1687
  %1705 = vmatmul.f32.gmra.mxu0 %v1681
  %v1706 = vpop.f32.mrf.mxu0
  %v1707 = vadd.f32 0.0, %v1706
  %1708 = vmatmul.f32.gmra.mxu0 %v1684
  %v1709 = vpop.f32.mrf.mxu0
  %v1710 = vadd.f32 0.0, %v1709
  %1711 = vdwg.mxu0
  %v1712 = vadd.f32 %v1666, %v1707
  %v1713 = vadd.f32 %v1667, %v1710
  %1714 = vset.pattern.permute.xlu0 6
  %1715 = vperm.xlu0 %1714, %v1438
  %v1716 = vpop.permute.xlu0 %1715
  %1718 = vset.pattern.permute.xlu0 6
  %1719 = vperm.xlu0 %1718, %v1439
  %v1720 = vpop.permute.xlu0 %1719
  %v1722 = vadd.f32 %v1433, %v1716
  %v1723 = vadd.f32 %v1436, %v1720
  %s1724 = scalar_lea.vmem %s3, 12
  %v1725 = vld [vmem:[%s1724] sm:$0x3]
  %v1727 = vsel %vm1465, %v1722, 0
  %v1730 = vsel %vm1465, %v1723, 0
  %v1733 = vsel %vm129, %v1725, 0
  %1735 = vmatpush.msra.mxu0 0.0
  %1736 = vmatpush.msra.mxu0 0.0
  %1737 = vmatpush.msra.mxu0 0.0
  %1738 = vmatpush.msra.mxu0 0.0
  %1739 = vmatpush.msra.mxu0 0.0
  %1740 = vmatpush.msra.mxu0 0.0
  %1741 = vmatpush.msra.mxu0 0.0
  %1742 = vmatpush.msra.mxu0 0.0
  %1743 = vmatpush.msra.mxu0 0.0
  %1744 = vmatpush.msra.mxu0 0.0
  %1745 = vmatpush.msra.mxu0 0.0
  %1746 = vmatpush.msra.mxu0 0.0
  %1747 = vmatpush.msra.mxu0 0.0
  %1748 = vmatpush.msra.mxu0 0.0
  %1749 = vmatpush.msra.mxu0 0.0
  %1750 = vmatpush.msra.mxu0 %v1733
  %1751 = vmatmul.f32.gmra.mxu0 %v1727
  %v1752 = vpop.f32.mrf.mxu0
  %v1753 = vadd.f32 0.0, %v1752
  %1754 = vmatmul.f32.gmra.mxu0 %v1730
  %v1755 = vpop.f32.mrf.mxu0
  %v1756 = vadd.f32 0.0, %v1755
  %1757 = vdwg.mxu0
  %v1758 = vadd.f32 %v1712, %v1753
  %v1759 = vadd.f32 %v1713, %v1756
  %1762 = vrot.lane.b32.xlu0 %v1758, 87
  %v1763 = vpop.permute.xlu0 %1762
  %1764 = vrot.lane.b32.xlu0 %v1759, 87
  %v1765 = vpop.permute.xlu0 %1764
  %1768 = vrot.lane.b32.xlu0 %v1758, 1
  %v1769 = vpop.permute.xlu0 %1768
  %1770 = vrot.lane.b32.xlu0 %v1759, 1
  %v1771 = vpop.permute.xlu0 %1770
  %v1774 = vsel %vm96, %v1763, %v1769
  %v1775 = vsel %vm96, %v1765, %v1771
  %v1776 = vmul.f32 %v1774, %v81
  %v1777 = vmul.f32 %v1775, %v81
  %1778 = vrot.lane.b32.xlu0 %v1758, 127
  %v1779 = vpop.permute.xlu0 %1778
  %1780 = vrot.lane.b32.xlu0 %v1759, 127
  %v1781 = vpop.permute.xlu0 %1780
  %1784 = vrot.lane.b32.xlu0 %v1758, 41
  %v1785 = vpop.permute.xlu0 %1784
  %1786 = vrot.lane.b32.xlu0 %v1759, 41
  %v1787 = vpop.permute.xlu0 %1786
  %v1790 = vsel %vm595, %v1779, %v1785
  %v1791 = vsel %vm595, %v1781, %v1787
  %v1792 = vmul.f32 %v1790, %v84
  %v1793 = vmul.f32 %v1791, %v84
  %v1794 = vld [vmem:[%s1 + $0x160] sm:$0xff]
  %v1795 = vld [vmem:[%s1 + $0x168] sm:$0xff]
  %v1796 = vld [vmem:[%s1 + $0x170] sm:$0xff]
  %v1797 = vld [vmem:[%s1 + $0x178] sm:$0xff]
  %1799 = vset.pattern.permute.xlu0 0
  %1800 = vperm.xlu0 %1799, %v1796
  %v1801 = vpop.permute.xlu0 %1800
  %1804 = vset.pattern.permute.xlu0 0
  %1805 = vperm.xlu0 %1804, %v1797
  %v1806 = vpop.permute.xlu0 %1805
  %v1809 = vsel %vm614, %v1794, 0
  %v1812 = vsel %vm614, %v1795, 0
  %1814 = vmatpush.msra.mxu0 0.0
  %1815 = vmatpush.msra.mxu0 0.0
  %1816 = vmatpush.msra.mxu0 0.0
  %1817 = vmatpush.msra.mxu0 0.0
  %1818 = vmatpush.msra.mxu0 0.0
  %1819 = vmatpush.msra.mxu0 0.0
  %1820 = vmatpush.msra.mxu0 0.0
  %1821 = vmatpush.msra.mxu0 0.0
  %1822 = vmatpush.msra.mxu0 0.0
  %1823 = vmatpush.msra.mxu0 0.0
  %1824 = vmatpush.msra.mxu0 %v1793
  %1825 = vmatpush.msra.mxu0 %v1792
  %1826 = vmatpush.msra.mxu0 %v1759
  %1827 = vmatpush.msra.mxu0 %v1758
  %1828 = vmatpush.msra.mxu0 %v1777
  %1829 = vmatpush.msra.mxu0 %v1776
  %1830 = vmatmul.f32.gmra.mxu0 %v1809
  %v1831 = vpop.f32.mrf.mxu0
  %v1832 = vadd.f32 %v1801, %v1831
  %1833 = vmatmul.f32.gmra.mxu0 %v1812
  %v1834 = vpop.f32.mrf.mxu0
  %v1835 = vadd.f32 %v1806, %v1834
  %1836 = vdwg.mxu0
  %v1837 = vsel %vm325, %v1832, 0.0
  %1838 = vadd.xlane.f32.xlu0 %v1837
  %v1839 = vpop.xlane.xlu0 %1838
  %v1840 = vsel %vm325, %v1835, 0.0
  %1841 = vadd.xlane.f32.xlu0 %v1840
  %v1842 = vpop.xlane.xlu0 %1841
  %v1843 = vmul.f32 %v1832, %v1832
  %v1844 = vmul.f32 %v1835, %v1835
  %v1845 = vsel %vm325, %v1843, 0.0
  %1846 = vadd.xlane.f32.xlu0 %v1845
  %v1847 = vpop.xlane.xlu0 %1846
  %v1848 = vsel %vm325, %v1844, 0.0
  %1849 = vadd.xlane.f32.xlu0 %v1848
  %v1850 = vpop.xlane.xlu0 %1849
  %v1851 = vmul.f32 %v1839, 0.023809524
  %v1852 = vmul.f32 %v1842, 0.023809524
  %v1853 = vmul.f32 %v1847, 0.023809524
  %v1854 = vmul.f32 %v1850, 0.023809524
  %v1855 = vmul.f32 %v1851, %v1851
  %v1856 = vmul.f32 %v1852, %v1852
  %v1857 = vsub.f32 %v1853, %v1855
  %v1858 = vsub.f32 %v1854, %v1856
  %v1859 = vld [vmem:[%s1 + $0x180] sm:$0xff]
  %v1860 = vld [vmem:[%s1 + $0x188] sm:$0xff]
  %v1861 = vsub.f32 %v1832, %v1851
  %v1862 = vsub.f32 %v1835, %v1852
  %1864 = vset.pattern.permute.xlu0 0
  %1865 = vperm.xlu0 %1864, %v1859
  %v1866 = vpop.permute.xlu0 %1865
  %1869 = vset.pattern.permute.xlu0 0
  %1870 = vperm.xlu0 %1869, %v1860
  %v1871 = vpop.permute.xlu0 %1870
  %v1873 = vmul.f32 %v1866, %v1861
  %v1874 = vmul.f32 %v1871, %v1862
  %v1875 = vadd.f32 %v1857, 1e-05
  %v1876 = vadd.f32 %v1858, 1e-05
  %v1877 = vrsqrt.pop %v1875
  %v1878 = vmul.f32 %v1877, %v1875
  %v1879 = vmul.f32 %v1878, %v1877
  %v1880 = vmul.f32 0.5, %v1879
  %v1881 = vsub.f32 1.5, %v1880
  %v1882 = vmul.f32 %v1877, %v1881
  %vm1883 = vweird.f32 %v1875
  %vm1884 = vweird.f32 %v1877
  %vm1885 = vmor %vm1883, %vm1884
  %v1886 = vsel %vm1885, %v1877, %v1882
  %v1887 = vrsqrt.pop %v1876
  %v1888 = vmul.f32 %v1887, %v1876
  %v1889 = vmul.f32 %v1888, %v1887
  %v1890 = vmul.f32 0.5, %v1889
  %v1891 = vsub.f32 1.5, %v1890
  %v1892 = vmul.f32 %v1887, %v1891
  %vm1893 = vweird.f32 %v1876
  %vm1894 = vweird.f32 %v1887
  %vm1895 = vmor %vm1893, %vm1894
  %v1896 = vsel %vm1895, %v1887, %v1892
  %v1897 = vmul.f32 %v1873, %v1886
  %v1898 = vmul.f32 %v1874, %v1896
  %v1899 = vld [vmem:[%s1 + $0x190] sm:$0xff]
  %v1900 = vld [vmem:[%s1 + $0x198] sm:$0xff]
  %1902 = vset.pattern.permute.xlu0 0
  %1903 = vperm.xlu0 %1902, %v1899
  %v1904 = vpop.permute.xlu0 %1903
  %1907 = vset.pattern.permute.xlu0 0
  %1908 = vperm.xlu0 %1907, %v1900
  %v1909 = vpop.permute.xlu0 %1908
  %v1911 = vadd.f32 %v1897, %v1904
  %v1912 = vadd.f32 %v1898, %v1909
  %v1913 = vmax.f32 %v1911, 0.0
  %v1914 = vmax.f32 %v1912, 0.0
  %v1915 = vld [vmem:[%s1 + $0x258] sm:$0xff]
  %v1916 = vld [vmem:[%s1 + $0x260] sm:$0xff]
  %v1917 = vld [vmem:[%s1 + $0x268] sm:$0x1f]
  %v1919 = vsel %vm562, %v1913, 0
  %v1922 = vsel %vm562, %v1914, 0
  %vm1924 = vcmask 1044480
  %v1926 = vsel %vm1924, %v1917, 0
  %1928 = vmatpush.msra.mxu0 0.0
  %1929 = vmatpush.msra.mxu0 0.0
  %1930 = vmatpush.msra.mxu0 0.0
  %1931 = vmatpush.msra.mxu0 0.0
  %1932 = vmatpush.msra.mxu0 0.0
  %1933 = vmatpush.msra.mxu0 0.0
  %1934 = vmatpush.msra.mxu0 0.0
  %1935 = vmatpush.msra.mxu0 0.0
  %1936 = vmatpush.msra.mxu0 0.0
  %1937 = vmatpush.msra.mxu0 0.0
  %1938 = vmatpush.msra.mxu0 0.0
  %1939 = vmatpush.msra.mxu0 0.0
  %1940 = vmatpush.msra.mxu0 0.0
  %1941 = vmatpush.msra.mxu0 %v1926
  %1942 = vmatpush.msra.mxu0 %v1916
  %1943 = vmatpush.msra.mxu0 %v1915
  %1944 = vmatmul.f32.gmra.mxu0 %v1919
  %v1945 = vpop.f32.mrf.mxu0
  %v1946 = vadd.f32 0.0, %v1945
  %1947 = vmatmul.f32.gmra.mxu0 %v1922
  %v1948 = vpop.f32.mrf.mxu0
  %v1949 = vadd.f32 0.0, %v1948
  %1950 = vdwg.mxu0
  %1951 = vrot.lane.b32.xlu0 %v1913, 107
  %v1952 = vpop.permute.xlu0 %1951
  %1953 = vrot.lane.b32.xlu0 %v1914, 107
  %v1954 = vpop.permute.xlu0 %1953
  %v1955 = vsel %vm562, %v1952, 0
  %v1957 = vsel %vm562, %v1954, 0
  %1959 = vmatpush.msra.mxu0 0.0
  %1960 = vmatpush.msra.mxu0 0.0
  %1961 = vmatpush.msra.mxu0 0.0
  %1962 = vmatpush.msra.mxu0 0.0
  %1963 = vmatpush.msra.mxu0 0.0
  %1964 = vmatpush.msra.mxu0 0.0
  %1965 = vmatpush.msra.mxu0 0.0
  %1966 = vmatpush.msra.mxu0 0.0
  %1967 = vmatpush.msra.mxu0 0.0
  %1968 = vmatpush.msra.mxu0 0.0
  %1969 = vmatpush.msra.mxu0 0.0
  %1970 = vmatpush.msra.mxu0 0.0
  %1971 = vmatpush.msra.mxu0 0.0
  %1972 = vmatpush.msra.mxu0 %v1926
  %1973 = vmatpush.msra.mxu0 %v1916
  %1974 = vmatpush.msra.mxu0 %v1915
  %1975 = vmatmul.f32.gmra.mxu0 %v1955
  %v1976 = vpop.f32.mrf.mxu0
  %v1977 = vadd.f32 0.0, %v1976
  %1978 = vmatmul.f32.gmra.mxu0 %v1957
  %v1979 = vpop.f32.mrf.mxu0
  %v1980 = vadd.f32 0.0, %v1979
  %1981 = vdwg.mxu0
  %1984 = vrot.lane.b32.xlu0 %v1977, 42
  %v1985 = vpop.permute.xlu0 %1984
  %1986 = vrot.lane.b32.xlu0 %v1980, 42
  %v1987 = vpop.permute.xlu0 %1986
  %v1990 = vsel %vm325, %v1946, %v1985
  %v1991 = vsel %vm325, %v1949, %v1987
  %1994 = vrot.lane.b32.xlu0 %v1990, 45
  %v1995 = vpop.permute.xlu0 %1994
  %1996 = vrot.lane.b32.xlu0 %v1991, 45
  %v1997 = vpop.permute.xlu0 %1996
  %2000 = vrot.lane.b32.xlu0 %v1990, 1
  %v2001 = vpop.permute.xlu0 %2000
  %2002 = vrot.lane.b32.xlu0 %v1991, 1
  %v2003 = vpop.permute.xlu0 %2002
  %v2006 = vsel %vm96, %v1995, %v2001
  %v2007 = vsel %vm96, %v1997, %v2003
  %v2008 = vmul.f32 %v2006, %v64
  %v2009 = vmul.f32 %v2007, %v64
  %2010 = vrot.lane.b32.xlu0 %v1990, 127
  %v2011 = vpop.permute.xlu0 %2010
  %2012 = vrot.lane.b32.xlu0 %v1991, 127
  %v2013 = vpop.permute.xlu0 %2012
  %2016 = vrot.lane.b32.xlu0 %v1990, 83
  %v2017 = vpop.permute.xlu0 %2016
  %2018 = vrot.lane.b32.xlu0 %v1991, 83
  %v2019 = vpop.permute.xlu0 %2018
  %v2022 = vsel %vm342, %v2011, %v2017
  %v2023 = vsel %vm342, %v2013, %v2019
  %v2024 = vmul.f32 %v2022, %v67
  %v2025 = vmul.f32 %v2023, %v67
  %v2026 = vld [vmem:[%s1 + $0x1a0] sm:$0xff]
  %v2027 = vld [vmem:[%s1 + $0x1a8] sm:$0xff]
  %2029 = vset.pattern.permute.xlu0 0
  %2030 = vperm.xlu0 %2029, %v2027
  %v2031 = vpop.permute.xlu0 %2030
  %v2034 = vsel %vm614, %v2026, 0
  %2036 = vmatpush.msra.mxu0 0.0
  %2037 = vmatpush.msra.mxu0 0.0
  %2038 = vmatpush.msra.mxu0 0.0
  %2039 = vmatpush.msra.mxu0 0.0
  %2040 = vmatpush.msra.mxu0 0.0
  %2041 = vmatpush.msra.mxu0 0.0
  %2042 = vmatpush.msra.mxu0 0.0
  %2043 = vmatpush.msra.mxu0 0.0
  %2044 = vmatpush.msra.mxu0 0.0
  %2045 = vmatpush.msra.mxu0 0.0
  %2046 = vmatpush.msra.mxu0 %v2025
  %2047 = vmatpush.msra.mxu0 %v2024
  %2048 = vmatpush.msra.mxu0 %v1991
  %2049 = vmatpush.msra.mxu0 %v1990
  %2050 = vmatpush.msra.mxu0 %v2009
  %2051 = vmatpush.msra.mxu0 %v2008
  %2052 = vmatmul.f32.gmra.mxu0 %v2034
  %v2053 = vpop.f32.mrf.mxu0
  %v2054 = vadd.f32 %v2031, %v2053
  %2055 = vdwg.mxu0
  %v2056 = vsel %vm264, %v2054, 0.0
  %2057 = vadd.xlane.f32.xlu0 %v2056
  %v2058 = vpop.xlane.xlu0 %2057
  %v2059 = vmul.f32 %v2054, %v2054
  %v2060 = vsel %vm264, %v2059, 0.0
  %2061 = vadd.xlane.f32.xlu0 %v2060
  %v2062 = vpop.xlane.xlu0 %2061
  %v2063 = vmul.f32 %v2058, 0.011904762
  %v2064 = vmul.f32 %v2062, 0.011904762
  %v2065 = vmul.f32 %v2063, %v2063
  %v2066 = vsub.f32 %v2064, %v2065
  %v2067 = vld [vmem:[%s1 + $0x1b0] sm:$0xff]
  %v2068 = vsub.f32 %v2054, %v2063
  %2070 = vset.pattern.permute.xlu0 0
  %2071 = vperm.xlu0 %2070, %v2067
  %v2072 = vpop.permute.xlu0 %2071
  %v2074 = vmul.f32 %v2072, %v2068
  %v2075 = vadd.f32 %v2066, 1e-05
  %v2076 = vrsqrt.pop %v2075
  %v2077 = vmul.f32 %v2076, %v2075
  %v2078 = vmul.f32 %v2077, %v2076
  %v2079 = vmul.f32 0.5, %v2078
  %v2080 = vsub.f32 1.5, %v2079
  %v2081 = vmul.f32 %v2076, %v2080
  %vm2082 = vweird.f32 %v2075
  %vm2083 = vweird.f32 %v2076
  %vm2084 = vmor %vm2082, %vm2083
  %v2085 = vsel %vm2084, %v2076, %v2081
  %v2086 = vmul.f32 %v2074, %v2085
  %v2087 = vld [vmem:[%s1 + $0x1b8] sm:$0xff]
  %2089 = vset.pattern.permute.xlu0 0
  %2090 = vperm.xlu0 %2089, %v2087
  %v2091 = vpop.permute.xlu0 %2090
  %v2093 = vadd.f32 %v2086, %v2091
  %v2094 = vmax.f32 %v2093, 0.0
  %v2095 = vld [vmem:[%s1 + $0x270] sm:$0xff]
  %v2096 = vld [vmem:[%s1 + $0x278] sm:$0xff]
  %v2097 = vld [vmem:[%s1 + $0x280] sm:$0xff]
  %v2098 = vld [vmem:[%s1 + $0x288] sm:$0xff]
  %v2099 = vld [vmem:[%s1 + $0x290] sm:$0xff]
  %v2100 = vld [vmem:[%s1 + $0x298] sm:$0x3]
  %v2102 = vsel %vm325, %v2094, 0
  %v2105 = vsel %vm129, %v2100, 0
  %2107 = vmatpush.msra.mxu0 0.0
  %2108 = vmatpush.msra.mxu0 0.0
  %2109 = vmatpush.msra.mxu0 0.0
  %2110 = vmatpush.msra.mxu0 0.0
  %2111 = vmatpush.msra.mxu0 0.0
  %2112 = vmatpush.msra.mxu0 0.0
  %2113 = vmatpush.msra.mxu0 0.0
  %2114 = vmatpush.msra.mxu0 0.0
  %2115 = vmatpush.msra.mxu0 0.0
  %2116 = vmatpush.msra.mxu0 0.0
  %2117 = vmatpush.msra.mxu0 %v2105
  %2118 = vmatpush.msra.mxu0 %v2099
  %2119 = vmatpush.msra.mxu0 %v2098
  %2120 = vmatpush.msra.mxu0 %v2097
  %2121 = vmatpush.msra.mxu0 %v2096
  %2122 = vmatpush.msra.mxu0 %v2095
  %2123 = vmatmul.f32.gmra.mxu0 %v2102
  %v2124 = vpop.f32.mrf.mxu0
  %v2125 = vadd.f32 0.0, %v2124
  %2126 = vdwg.mxu0
  %2127 = vrot.lane.b32.xlu0 %v2094, 86
  %v2128 = vpop.permute.xlu0 %2127
  %v2129 = vsel %vm325, %v2128, 0
  %2131 = vmatpush.msra.mxu0 0.0
  %2132 = vmatpush.msra.mxu0 0.0
  %2133 = vmatpush.msra.mxu0 0.0
  %2134 = vmatpush.msra.mxu0 0.0
  %2135 = vmatpush.msra.mxu0 0.0
  %2136 = vmatpush.msra.mxu0 0.0
  %2137 = vmatpush.msra.mxu0 0.0
  %2138 = vmatpush.msra.mxu0 0.0
  %2139 = vmatpush.msra.mxu0 0.0
  %2140 = vmatpush.msra.mxu0 0.0
  %2141 = vmatpush.msra.mxu0 %v2105
  %2142 = vmatpush.msra.mxu0 %v2099
  %2143 = vmatpush.msra.mxu0 %v2098
  %2144 = vmatpush.msra.mxu0 %v2097
  %2145 = vmatpush.msra.mxu0 %v2096
  %2146 = vmatpush.msra.mxu0 %v2095
  %2147 = vmatmul.f32.gmra.mxu0 %v2129
  %v2148 = vpop.f32.mrf.mxu0
  %v2149 = vadd.f32 0.0, %v2148
  %2150 = vdwg.mxu0
  %2152 = vrot.lane.b32.xlu0 %v2149, 84
  %v2153 = vpop.permute.xlu0 %2152
  %v2155 = vsel %vm264, %v2125, %v2153
  %2156 = vrot.lane.b32.xlu0 %v2153, 89
  %v2157 = vpop.permute.xlu0 %2156
  %2160 = vrot.lane.b32.xlu0 %v2155, 1
  %v2161 = vpop.permute.xlu0 %2160
  %2162 = vrot.lane.b32.xlu0 %v2153, 1
  %v2163 = vpop.permute.xlu0 %2162
  %v2164 = vsel %vm96, %v2161, %v2163
  %v2167 = vsel %vm96, %v2157, %v2161
  %v2168 = vmul.f32 %v2167, %v43
  %v2169 = vmul.f32 %v2164, %v44
  %2170 = vrot.lane.b32.xlu0 %v2155, 127
  %v2171 = vpop.permute.xlu0 %2170
  %2172 = vrot.lane.b32.xlu0 %v2153, 127
  %v2173 = vpop.permute.xlu0 %2172
  %v2174 = vsel %vm107, %v2171, %v2173
  %2177 = vrot.lane.b32.xlu0 %v2155, 39
  %v2178 = vpop.permute.xlu0 %2177
  %v2180 = vsel %vm114, %v2173, %v2178
  %v2181 = vmul.f32 %v2174, %v49
  %v2182 = vmul.f32 %v2180, %v50
  %v2183 = vld [vmem:[%s1 + $0x1c0] sm:$0x1]
  %v2184 = vld [vmem:[%s1 + $0x1c8] sm:$0x1]
  %2186 = vset.pattern.permute.xlu0 0
  %2187 = vperm.xlu0 %2186, %v2184
  %v2188 = vpop.permute.xlu0 %2187
  %v2191 = vsel %vm359, %v2183, 0
  %2193 = vmatpush.msra.mxu0 0.0
  %2194 = vmatpush.msra.mxu0 0.0
  %2195 = vmatpush.msra.mxu0 0.0
  %2196 = vmatpush.msra.mxu0 0.0
  %2197 = vmatpush.msra.mxu0 0.0
  %2198 = vmatpush.msra.mxu0 0.0
  %2199 = vmatpush.msra.mxu0 0.0
  %2200 = vmatpush.msra.mxu0 0.0
  %2201 = vmatpush.msra.mxu0 0.0
  %2202 = vmatpush.msra.mxu0 0.0
  %2203 = vmatpush.msra.mxu0 0.0
  %2204 = vmatpush.msra.mxu0 0.0
  %2205 = vmatpush.msra.mxu0 0.0
  %2206 = vmatpush.msra.mxu0 %v2181
  %2207 = vmatpush.msra.mxu0 %v2155
  %2208 = vmatpush.msra.mxu0 %v2168
  %2209 = vmatmul.f32.gmra.mxu0 %v2191
  %v2210 = vpop.f32.mrf.mxu0
  %v2211 = vadd.f32 %v2188, %v2210
  %2212 = vdwg.mxu0
  %2213 = vmatpush.msra.mxu0 0.0
  %2214 = vmatpush.msra.mxu0 0.0
  %2215 = vmatpush.msra.mxu0 0.0
  %2216 = vmatpush.msra.mxu0 0.0
  %2217 = vmatpush.msra.mxu0 0.0
  %2218 = vmatpush.msra.mxu0 0.0
  %2219 = vmatpush.msra.mxu0 0.0
  %2220 = vmatpush.msra.mxu0 0.0
  %2221 = vmatpush.msra.mxu0 0.0
  %2222 = vmatpush.msra.mxu0 0.0
  %2223 = vmatpush.msra.mxu0 0.0
  %2224 = vmatpush.msra.mxu0 0.0
  %2225 = vmatpush.msra.mxu0 0.0
  %2226 = vmatpush.msra.mxu0 %v2182
  %2227 = vmatpush.msra.mxu0 %v2153
  %2228 = vmatpush.msra.mxu0 %v2169
  %2229 = vmatmul.f32.gmra.mxu0 %v2191
  %v2230 = vpop.f32.mrf.mxu0
  %v2231 = vadd.f32 %v2188, %v2230
  %2232 = vdwg.mxu0
  %v2235 = vrot.slane %v2231, 7
  %v2236 = vsel %vm126, %v2211, %v2235
  %v2238 = vlaneseq
  %vm2239 = vcmp.ge.s32.totalorder %v2238, 0
  %vm2240 = vcmp.lt.s32.totalorder %v2238, 168
  %vm2241 = vmand %vm2239, %vm2240
  %2242 = vst.msk [vmem:[%s4] sm:$0x3] %vm2241, %v2236
  %2243 = vst.msk [vmem:[%s5] sm:$0xff] %vm1465, %v1318
  %2244 = vst.msk [vmem:[%s5 + $0x8] sm:$0xff] %vm1465, %v1319
  %2245 = vst.msk [vmem:[%s5 + $0x10] sm:$0xff] %vm1465, %v1320
  %2246 = vst.msk [vmem:[%s5 + $0x18] sm:$0xff] %vm1465, %v1321
  // Predicated region
  $region18: #{_forward_impl.1} parent=0 // pred_check
    _
  $region19: #{_forward_impl.1} parent=0 // pred_check_branch
    %2248 = sbr.rel (0) target = $region21
  $region20: #{_forward_impl.1} parent=0 // pred_region
    _
  $region21: #{_forward_impl.1} parent=0 // pred_fallthru
    _
  // Predicated region
  $region22: #{_forward_impl.1} parent=0 // pred_check
    _
  $region23: #{_forward_impl.1} parent=0 // pred_check_branch
    %2250 = sbr.rel (0) target = $region25
  $region24: #{_forward_impl.1} parent=0 // pred_region
    _
  $region25: #{_forward_impl.1} parent=0 // pred_fallthru
    _
  // Predicated region
  $region26: #{_forward_impl.1} parent=0 // pred_check
    _
  $region27: #{_forward_impl.1} parent=0 // pred_check_branch
    %2252 = sbr.rel (0) target = $region29
  $region28: #{_forward_impl.1} parent=0 // pred_region
    _
  $region29: #{_forward_impl.1} parent=0 // pred_fallthru
    _
  // Predicated region
  $region30: #{_forward_impl.1} parent=0 // pred_check
    _
  $region31: #{_forward_impl.1} parent=0 // pred_check_branch
    %2254 = sbr.rel (0) target = $region33
  $region32: #{_forward_impl.1} parent=0 // pred_region
    _
  $region33: #{_forward_impl.1} parent=0 // pred_fallthru
    _

</llo_original>
